<compile_context>
chip_gen: v6e
topology: v6e:2x2x1
jax: 0.10.0
libtpu: 0.0.40
codegen_flags: <defaults>
</compile_context>

<pallas_src>
import jax
import jax.numpy as jnp
from jax.experimental import pallas as pl
from jax.experimental.pallas import tpu as pltpu


OUT_LANES = 128   # lane-dense output slab width
_MIN_TILE = 16    # row-tile granularity (bf16 sublane-packing friendly)


def _sigmoid(x):
    # sigmoid(x) == 0.5*tanh(0.5*x) + 0.5 : one EUP op instead of exp+recip.
    return 0.5 * jnp.tanh(0.5 * x) + 0.5


# --------------------------------------------------------------------------
# Pallas kernel: fused (source ++ target) forward over one row tile
# --------------------------------------------------------------------------
def net_fused_kernel(
    stu_ref,    # (TB, D)    student low-dim embedding rows, bf16
    exe_ref,    # (TB, D)    exercise (k_difficulty) low-dim rows, bf16
    kn_ref,     # (TB, K)    knowledge relevancy vectors (0/1), bf16
    kembT_ref,  # (D, K)     knowledge embedding table (pre-transposed), bf16
    p1w_ref,    # (K, 512)   prednet_full1 weight (pre-transposed), bf16
    p2w_ref,    # (512, 256) prednet_full2 weight (pre-transposed), bf16
    pfw_ref,    # (256, 128) fused [p3 | dc1 | 0] weight, bf16
    sm_ref,     # (8, SW)    consolidated small params, f32
    out_ref,    # (TB, 128)  f32 slab: lane 0 = pred, lanes 1..2 = dom
):
    f32 = jnp.float32
    bf16 = jnp.bfloat16
    tb, d = stu_ref.shape

    sm = sm_ref[...]
    p1b = sm[0:1, 0:512]          # prednet_full1 bias
    p2b = sm[1:2, 0:256]          # prednet_full2 bias
    pfb = sm[2:3, 0:OUT_LANES]    # fused [p3_b | dc1_b | 0] bias
    l1w = sm[3:4, 0:d]            # layer1 weight row
    dc2w0 = sm[4:5, 0:10]         # dc2 weight, output column 0
    dc2w1 = sm[5:6, 0:10]         # dc2 weight, output column 1
    l1b = sm[6:7, 0:1]            # layer1 bias
    dc2b0 = sm[6:7, 1:2]          # dc2 bias[0]
    dc2b1 = sm[6:7, 2:3]          # dc2 bias[1]

    stu = stu_ref[...].astype(f32)
    exe = exe_ref[...].astype(f32)

    # --- both knowledge-space projections in ONE bf16 MXU pass ---
    # stu_emb = sigmoid(stu_low @ kemb.T), k_difficulty = sigmoid(exe_low @ kemb.T)
    se = jnp.concatenate([stu, exe], axis=0).astype(bf16)          # (2*TB, D)
    se_emb = _sigmoid(jnp.dot(se, kembT_ref[...], preferred_element_type=f32))
    stu_emb = se_emb[:tb]
    k_diff = se_emb[tb:]

    # e_discrimination = sigmoid(layer1(exe_low)) * 10
    # width-1 projection: VPU multiply + XLU reduce, stays off the MXU
    e_disc = _sigmoid(jnp.sum(exe * l1w, axis=-1, keepdims=True) + l1b) * 10.0

    # input_x = e_discrimination * (stu_emb - k_difficulty) * kn_emb
    x = e_disc * (stu_emb - k_diff) * kn_ref[...].astype(f32)

    # prednet
    # TODO(synk): nn.Dropout(p=0.5) is modeled as eval-mode identity (no RNG mask).
    h1 = _sigmoid(
        jnp.dot(x.astype(bf16), p1w_ref[...], preferred_element_type=f32) + p1b)
    h2 = _sigmoid(
        jnp.dot(h1.astype(bf16), p2w_ref[...], preferred_element_type=f32) + p2b)

    # fused prednet_full3 + dc1: one bf16 MXU pass.
    # lane 0 = p3 logit, lanes 1..10 = dc1 output, other lanes 0.
    # ReverseLayerF.apply is identity in the forward pass (alpha only flips grads).
    fused = jnp.dot(h2.astype(bf16), pfw_ref[...], preferred_element_type=f32) + pfb

    pred = _sigmoid(fused[:, 0:1])                # (TB, 1)
    dh = jnp.maximum(fused[:, 1:11], 0.0)         # (TB, 10) relu(dc1)

    # dc2 (contraction 10, out 2) entirely on the VPU/XLU
    dom0 = jnp.sum(dh * dc2w0, axis=-1, keepdims=True) + dc2b0
    dom1 = jnp.sum(dh * dc2w1, axis=-1, keepdims=True) + dc2b1

    # Pack pred + dom into one lane-dense slab -> single unmasked store/DMA.
    lane = jax.lax.broadcasted_iota(jnp.int32, (tb, OUT_LANES), 1)
    slab = jnp.where(lane == 0, pred,
                     jnp.where(lane == 1, dom0,
                               jnp.where(lane == 2, dom1, 0.0)))
    out_ref[...] = slab.astype(out_ref.dtype)


# --------------------------------------------------------------------------
# Tiling / pallas_call wrapper
# --------------------------------------------------------------------------
def _choose_row_tiling(total_rows, max_tile=1024):
    """Pick (row_tile, padded_rows): tile % 16 == 0, tile divides padded, and
    padded // tile >= 2 so ("parallel",) always has >=2 steps to split across
    v7x's two TensorCores."""
    total_rows = max(int(total_rows), 1)
    padded = -(-total_rows // _MIN_TILE) * _MIN_TILE
    half = -(-padded // 2)
    tile = -(-half // _MIN_TILE) * _MIN_TILE
    tile = max(_MIN_TILE, min(tile, max_tile))
    padded = -(-total_rows // tile) * tile
    if padded // tile < 2:
        padded = 2 * tile           # force >=2 grid steps (megacore)
    return tile, padded


def _run_fused(stu_rows, exe_rows, kn_rows, kp, tile, padded):
    D = stu_rows.shape[1]
    K = kn_rows.shape[1]

    def rows(feat):
        return pl.BlockSpec((tile, feat), lambda i: (i, 0))

    def resident(arr):
        # full-shape block, same block index every grid step -> fetched once
        return pl.BlockSpec(arr.shape, lambda i: (0, 0))

    in_specs = [
        rows(D),                    # stu rows (bf16)
        rows(D),                    # exe rows (bf16)
        rows(K),                    # kn rows (bf16)
        resident(kp["kembT"]),
        resident(kp["p1w"]),
        resident(kp["p2w"]),
        resident(kp["pfw"]),
        resident(kp["smalls"]),
    ]

    return pl.pallas_call(
        net_fused_kernel,
        out_shape=jax.ShapeDtypeStruct((padded, OUT_LANES), jnp.float32),
        grid_spec=pltpu.PrefetchScalarGridSpec(
            num_scalar_prefetch=0,
            grid=(padded // tile,),
            in_specs=in_specs,
            out_specs=pl.BlockSpec((tile, OUT_LANES), lambda i: (i, 0)),
        ),
        compiler_params=pltpu.CompilerParams(
            dimension_semantics=("parallel",),   # megacore row sharding on v7x
            vmem_limit_bytes=48 * 1024 * 1024,   # safe on v5e/v6e (128 MiB) and v7x (64 MiB)
        ),
    )(stu_rows, exe_rows, kn_rows,
      kp["kembT"], kp["p1w"], kp["p2w"], kp["pfw"], kp["smalls"])


# --------------------------------------------------------------------------
# Parameter construction (deterministic, xavier-normal like the module init)
# --------------------------------------------------------------------------
def init_params(key, student_n, exer_n, knowledge_n, low_dim):
    def xavier(k, shape):
        fan_out, fan_in = shape[0], shape[1]
        std = (2.0 / (fan_in + fan_out)) ** 0.5
        return std * jax.random.normal(k, shape, dtype=jnp.float32)

    ks = jax.random.split(key, 12)
    p1_len, p2_len = 512, 256
    return {
        "student_emb": xavier(ks[0], (student_n, low_dim)),
        "knowledge_emb": xavier(ks[1], (knowledge_n, low_dim)),
        "k_difficulty": xavier(ks[2], (exer_n, low_dim)),
        # PyTorch Linear layout (out, in); biases (1, out)
        "layer1_w": xavier(ks[3], (1, low_dim)),
        "layer1_b": jnp.zeros((1, 1), jnp.float32),
        "p1_w": xavier(ks[4], (p1_len, knowledge_n)),
        "p1_b": jnp.zeros((1, p1_len), jnp.float32),
        "p2_w": xavier(ks[5], (p2_len, p1_len)),
        "p2_b": jnp.zeros((1, p2_len), jnp.float32),
        "p3_w": xavier(ks[6], (1, p2_len)),
        "p3_b": jnp.zeros((1, 1), jnp.float32),
        "dc1_w": xavier(ks[7], (10, p2_len)),
        "dc1_b": jnp.zeros((1, 10), jnp.float32),
        "dc2_w": xavier(ks[8], (2, 10)),
        "dc2_b": jnp.zeros((1, 2), jnp.float32),
    }


def prepare_kernel_params(params):
    """Pre-transpose to (in, out), cast big matrices + embedding tables to bf16,
    fuse p3+dc1 into one (256,128) weight, and consolidate tiny params into one
    padded f32 array (all done once, outside the kernel)."""
    bf16 = jnp.bfloat16
    f32 = jnp.float32
    D = params["student_emb"].shape[1]
    P2 = params["p2_w"].shape[0]                     # 256

    # fused prednet_full3 + dc1 weight: lane 0 = p3, lanes 1..10 = dc1
    pfw = jnp.zeros((P2, OUT_LANES), f32)
    pfw = pfw.at[:, 0:1].set(params["p3_w"].T)       # (256, 1)
    pfw = pfw.at[:, 1:11].set(params["dc1_w"].T)     # (256, 10)
    pfb = jnp.zeros((OUT_LANES,), f32)
    pfb = pfb.at[0].set(params["p3_b"][0, 0])
    pfb = pfb.at[1:11].set(params["dc1_b"][0])

    # consolidated small-parameter slab (f32)
    SW = max(512, -(-D // 128) * 128)
    sm = jnp.zeros((8, SW), f32)
    sm = sm.at[0, :512].set(params["p1_b"][0])
    sm = sm.at[1, :256].set(params["p2_b"][0])
    sm = sm.at[2, :OUT_LANES].set(pfb)
    sm = sm.at[3, :D].set(params["layer1_w"][0])
    sm = sm.at[4, :10].set(params["dc2_w"][0])
    sm = sm.at[5, :10].set(params["dc2_w"][1])
    sm = sm.at[6, 0].set(params["layer1_b"][0, 0])
    sm = sm.at[6, 1].set(params["dc2_b"][0, 0])
    sm = sm.at[6, 2].set(params["dc2_b"][0, 1])

    return {
        # bf16 embedding tables -> gathered rows are already bf16 (half DMA)
        "student_emb": params["student_emb"].astype(bf16),
        "k_difficulty": params["k_difficulty"].astype(bf16),
        "kembT": params["knowledge_emb"].T.astype(bf16),   # (D, K)
        "p1w": params["p1_w"].T.astype(bf16),              # (K, 512)
        "p2w": params["p2_w"].T.astype(bf16),              # (512, 256)
        "pfw": pfw.astype(bf16),                           # (256, 128)
        "smalls": sm,                                      # (8, SW) f32
    }


# --------------------------------------------------------------------------
# Forward pass matching Net.forward(stu_id_s, exer_id_s, kn_emb_s,
#                                   stu_id_t, exer_id_t, kn_emb_t, alpha)
# --------------------------------------------------------------------------
@jax.jit
def net_forward(kparams, stu_id_s, exer_id_s, kn_emb_s,
                stu_id_t, exer_id_t, kn_emb_t, alpha):
    del alpha  # ReverseLayerF is identity in the forward pass
    bs, bt = stu_id_s.shape[0], stu_id_t.shape[0]
    total = bs + bt
    K = kn_emb_s.shape[1]
    tile, padded = _choose_row_tiling(total)
    pad_n = padded - total

    # pad the (tiny) id vectors, not the row matrices -> one gather pass each
    stu_ids = jnp.concatenate([stu_id_s, stu_id_t])
    exe_ids = jnp.concatenate([exer_id_s, exer_id_t])
    if pad_n:
        zid = jnp.zeros((pad_n,), stu_ids.dtype)
        stu_ids = jnp.concatenate([stu_ids, zid])
        exe_ids = jnp.concatenate([exe_ids, zid])

    stu_rows = kparams["student_emb"][stu_ids]       # (padded, D) bf16
    exe_rows = kparams["k_difficulty"][exe_ids]      # (padded, D) bf16

    kn_parts = [kn_emb_s.astype(jnp.bfloat16), kn_emb_t.astype(jnp.bfloat16)]
    if pad_n:
        kn_parts.append(jnp.zeros((pad_n, K), jnp.bfloat16))
    kn_rows = jnp.concatenate(kn_parts, axis=0)      # (padded, K) bf16

    slab = _run_fused(stu_rows, exe_rows, kn_rows, kparams, tile, padded)
    pred_s = slab[:bs, 0:1]
    dom_s = slab[:bs, 1:3]
    dom_t = slab[bs:total, 1:3]
    return pred_s, dom_s, dom_t


# --------------------------------------------------------------------------
# Pure-JAX f32 reference (same math) for a sanity check
# --------------------------------------------------------------------------
def net_forward_ref(params, stu_id_s, exer_id_s, kn_emb_s,
                    stu_id_t, exer_id_t, kn_emb_t, alpha):
    del alpha
    kemb = params["knowledge_emb"]

    def branch(stu_id, exer_id, kn):
        stu_low = params["student_emb"][stu_id]
        exe_low = params["k_difficulty"][exer_id]
        stu_emb = jax.nn.sigmoid(stu_low @ kemb.T)
        k_diff = jax.nn.sigmoid(exe_low @ kemb.T)
        e_disc = jax.nn.sigmoid(
            exe_low @ params["layer1_w"].T + params["layer1_b"]) * 10.0
        x = e_disc * (stu_emb - k_diff) * kn
        h1 = jax.nn.sigmoid(x @ params["p1_w"].T + params["p1_b"])
        h2 = jax.nn.sigmoid(h1 @ params["p2_w"].T + params["p2_b"])
        pred = jax.nn.sigmoid(h2 @ params["p3_w"].T + params["p3_b"])
        dh = jnp.maximum(h2 @ params["dc1_w"].T + params["dc1_b"], 0.0)
        dom = dh @ params["dc2_w"].T + params["dc2_b"]
        return pred, dom

    pred_s, dom_s = branch(stu_id_s, exer_id_s, kn_emb_s)
    _, dom_t = branch(stu_id_t, exer_id_t, kn_emb_t)
    return pred_s, dom_s, dom_t


if __name__ == "__main__":
    # small, module-consistent shapes
    student_n, exer_n, knowledge_n, low_dim = 16, 32, 128, 32
    batch = 8

    key = jax.random.PRNGKey(0)
    kkey, k1, k2, k3, k4, k5, k6 = jax.random.split(key, 7)
    params = init_params(kkey, student_n, exer_n, knowledge_n, low_dim)
    kparams = prepare_kernel_params(params)

    stu_id_s = jax.random.randint(k1, (batch,), 0, student_n)
    exer_id_s = jax.random.randint(k2, (batch,), 0, exer_n)
    kn_emb_s = (jax.random.uniform(k3, (batch, knowledge_n)) > 0.5).astype(jnp.float32)
    stu_id_t = jax.random.randint(k4, (batch,), 0, student_n)
    exer_id_t = jax.random.randint(k5, (batch,), 0, exer_n)
    kn_emb_t = (jax.random.uniform(k6, (batch, knowledge_n)) > 0.5).astype(jnp.float32)
    alpha = 1.0

    out = net_forward(kparams, stu_id_s, exer_id_s, kn_emb_s,
                      stu_id_t, exer_id_t, kn_emb_t, alpha)
    out = jax.block_until_ready(out)

    ref = net_forward_ref(params, stu_id_s, exer_id_s, kn_emb_s,
                          stu_id_t, exer_id_t, kn_emb_t, alpha)
    for o, r in zip(out, ref):
        assert o.shape == r.shape, (o.shape, r.shape)
        err = float(jnp.max(jnp.abs(o - r)))
        # bf16 weight + input streaming for the big matmuls -> loose tolerance
        assert err < 4e-2, err

    print("KERNEL_OK")
</pallas_src>

<mosaic_0001>
module attributes {stable_mosaic.version = 11 : i64} {
  func.func @net_fused_kernel(%arg0: i32, %arg1: memref<16x32xbf16, #tpu.memory_space<vmem>>, %arg2: memref<16x32xbf16, #tpu.memory_space<vmem>>, %arg3: memref<16x128xbf16, #tpu.memory_space<vmem>>, %arg4: memref<32x128xbf16, #tpu.memory_space<vmem>>, %arg5: memref<128x512xbf16, #tpu.memory_space<vmem>>, %arg6: memref<512x256xbf16, #tpu.memory_space<vmem>>, %arg7: memref<256x128xbf16, #tpu.memory_space<vmem>>, %arg8: memref<8x512xf32, #tpu.memory_space<vmem>>, %arg9: memref<16x128xf32, #tpu.memory_space<vmem>>) attributes {dimension_semantics = [#tpu.dimension_semantics<parallel>], iteration_bounds = array<i64: 2>, scalar_prefetch = 0 : i64, scratch_operands = 0 : i64, tpu.core_type = #tpu.core_type<tc>, window_params = [{transform_indices = @transform_0, window_bounds = array<i64: 16, 32>}, {transform_indices = @transform_1, window_bounds = array<i64: 16, 32>}, {transform_indices = @transform_2, window_bounds = array<i64: 16, 128>}, {pipeline_mode = #tpu.pipeline_mode<synchronous>, transform_indices = @transform_3, window_bounds = array<i64: 32, 128>}, {pipeline_mode = #tpu.pipeline_mode<synchronous>, transform_indices = @transform_4, window_bounds = array<i64: 128, 512>}, {pipeline_mode = #tpu.pipeline_mode<synchronous>, transform_indices = @transform_5, window_bounds = array<i64: 512, 256>}, {pipeline_mode = #tpu.pipeline_mode<synchronous>, transform_indices = @transform_6, window_bounds = array<i64: 256, 128>}, {pipeline_mode = #tpu.pipeline_mode<synchronous>, transform_indices = @transform_7, window_bounds = array<i64: 8, 512>}, {transform_indices = @transform_8, window_bounds = array<i64: 16, 128>}]} {
    %c0 = arith.constant 0 : index
    %c0_0 = arith.constant 0 : index
    %0 = vector.load %arg8[%c0, %c0_0] : memref<8x512xf32, #tpu.memory_space<vmem>>, vector<8x512xf32>
    %1 = vector.extract_strided_slice %0 {offsets = [0, 0], sizes = [1, 512], strides = [1, 1]} : vector<8x512xf32> to vector<1x512xf32>
    %2 = vector.extract_strided_slice %0 {offsets = [1, 0], sizes = [1, 256], strides = [1, 1]} : vector<8x512xf32> to vector<1x256xf32>
    %3 = vector.extract_strided_slice %0 {offsets = [2, 0], sizes = [1, 128], strides = [1, 1]} : vector<8x512xf32> to vector<1x128xf32>
    %4 = vector.extract_strided_slice %0 {offsets = [3, 0], sizes = [1, 32], strides = [1, 1]} : vector<8x512xf32> to vector<1x32xf32>
    %5 = vector.extract_strided_slice %0 {offsets = [4, 0], sizes = [1, 10], strides = [1, 1]} : vector<8x512xf32> to vector<1x10xf32>
    %6 = vector.extract_strided_slice %0 {offsets = [5, 0], sizes = [1, 10], strides = [1, 1]} : vector<8x512xf32> to vector<1x10xf32>
    %7 = vector.extract_strided_slice %0 {offsets = [6, 0], sizes = [1, 1], strides = [1, 1]} : vector<8x512xf32> to vector<1x1xf32>
    %8 = vector.extract_strided_slice %0 {offsets = [6, 1], sizes = [1, 1], strides = [1, 1]} : vector<8x512xf32> to vector<1x1xf32>
    %9 = vector.extract_strided_slice %0 {offsets = [6, 2], sizes = [1, 1], strides = [1, 1]} : vector<8x512xf32> to vector<1x1xf32>
    %c0_1 = arith.constant 0 : index
    %c0_2 = arith.constant 0 : index
    %10 = vector.load %arg1[%c0_1, %c0_2] : memref<16x32xbf16, #tpu.memory_space<vmem>>, vector<16x32xbf16>
    %11 = arith.extf %10 : vector<16x32xbf16> to vector<16x32xf32>
    %c0_3 = arith.constant 0 : index
    %c0_4 = arith.constant 0 : index
    %12 = vector.load %arg2[%c0_3, %c0_4] : memref<16x32xbf16, #tpu.memory_space<vmem>>, vector<16x32xbf16>
    %13 = arith.extf %12 : vector<16x32xbf16> to vector<16x32xf32>
    %14 = tpu.concatenate %11, %13 in 0 : vector<16x32xf32>, vector<16x32xf32> -> vector<32x32xf32>
    %15 = arith.truncf %14 : vector<32x32xf32> to vector<32x32xbf16>
    %c0_5 = arith.constant 0 : index
    %c0_6 = arith.constant 0 : index
    %16 = vector.load %arg4[%c0_5, %c0_6] : memref<32x128xbf16, #tpu.memory_space<vmem>>, vector<32x128xbf16>
    %cst = arith.constant dense<0.000000e+00> : vector<32x128xf32>
    %17 = tpu.matmul %15, %16, %cst {dimension_numbers = #tpu.dot_dimension_numbers<[1], [0], [0], [1], [0, 0, 1, 1], [], []>} : vector<32x32xbf16>, vector<32x128xbf16>, vector<32x128xf32> -> vector<32x128xf32>
    %cst_7 = arith.constant 5.000000e-01 : f32
    %18 = vector.broadcast %cst_7 : f32 to vector<32x128xf32>
    %19 = arith.mulf %18, %17 : vector<32x128xf32>
    %20 = math.tanh %19 : vector<32x128xf32>
    %cst_8 = arith.constant 5.000000e-01 : f32
    %21 = vector.broadcast %cst_8 : f32 to vector<32x128xf32>
    %22 = arith.mulf %21, %20 : vector<32x128xf32>
    %cst_9 = arith.constant 5.000000e-01 : f32
    %23 = vector.broadcast %cst_9 : f32 to vector<32x128xf32>
    %24 = arith.addf %22, %23 : vector<32x128xf32>
    %25 = vector.extract_strided_slice %24 {offsets = [0, 0], sizes = [16, 128], strides = [1, 1]} : vector<32x128xf32> to vector<16x128xf32>
    %26 = vector.extract_strided_slice %24 {offsets = [16, 0], sizes = [16, 128], strides = [1, 1]} : vector<32x128xf32> to vector<16x128xf32>
    %27 = vector.broadcast %4 : vector<1x32xf32> to vector<16x32xf32>
    %28 = arith.mulf %13, %27 : vector<16x32xf32>
    %cst_10 = arith.constant dense<0.000000e+00> : vector<16xf32>
    %29 = vector.multi_reduction <add>, %28, %cst_10 [1] : vector<16x32xf32> to vector<16xf32>
    %30 = vector.shape_cast %29 : vector<16xf32> to vector<16x1xf32>
    %31 = vector.broadcast %7 : vector<1x1xf32> to vector<16x1xf32>
    %32 = arith.addf %30, %31 : vector<16x1xf32>
    %cst_11 = arith.constant 5.000000e-01 : f32
    %33 = vector.broadcast %cst_11 : f32 to vector<16x1xf32>
    %34 = arith.mulf %33, %32 : vector<16x1xf32>
    %35 = math.tanh %34 : vector<16x1xf32>
    %cst_12 = arith.constant 5.000000e-01 : f32
    %36 = vector.broadcast %cst_12 : f32 to vector<16x1xf32>
    %37 = arith.mulf %36, %35 : vector<16x1xf32>
    %cst_13 = arith.constant 5.000000e-01 : f32
    %38 = vector.broadcast %cst_13 : f32 to vector<16x1xf32>
    %39 = arith.addf %37, %38 : vector<16x1xf32>
    %cst_14 = arith.constant 1.000000e+01 : f32
    %40 = vector.broadcast %cst_14 : f32 to vector<16x1xf32>
    %41 = arith.mulf %39, %40 : vector<16x1xf32>
    %42 = arith.subf %25, %26 : vector<16x128xf32>
    %43 = vector.broadcast %41 : vector<16x1xf32> to vector<16x128xf32>
    %44 = arith.mulf %43, %42 : vector<16x128xf32>
    %c0_15 = arith.constant 0 : index
    %c0_16 = arith.constant 0 : index
    %45 = vector.load %arg3[%c0_15, %c0_16] : memref<16x128xbf16, #tpu.memory_space<vmem>>, vector<16x128xbf16>
    %46 = arith.extf %45 : vector<16x128xbf16> to vector<16x128xf32>
    %47 = arith.mulf %44, %46 : vector<16x128xf32>
    %48 = arith.truncf %47 : vector<16x128xf32> to vector<16x128xbf16>
    %c0_17 = arith.constant 0 : index
    %c0_18 = arith.constant 0 : index
    %49 = vector.load %arg5[%c0_17, %c0_18] : memref<128x512xbf16, #tpu.memory_space<vmem>>, vector<128x512xbf16>
    %cst_19 = arith.constant dense<0.000000e+00> : vector<16x512xf32>
    %50 = tpu.matmul %48, %49, %cst_19 {dimension_numbers = #tpu.dot_dimension_numbers<[1], [0], [0], [1], [0, 0, 1, 1], [], []>} : vector<16x128xbf16>, vector<128x512xbf16>, vector<16x512xf32> -> vector<16x512xf32>
    %51 = vector.broadcast %1 : vector<1x512xf32> to vector<16x512xf32>
    %52 = arith.addf %50, %51 : vector<16x512xf32>
    %cst_20 = arith.constant 5.000000e-01 : f32
    %53 = vector.broadcast %cst_20 : f32 to vector<16x512xf32>
    %54 = arith.mulf %53, %52 : vector<16x512xf32>
    %55 = math.tanh %54 : vector<16x512xf32>
    %cst_21 = arith.constant 5.000000e-01 : f32
    %56 = vector.broadcast %cst_21 : f32 to vector<16x512xf32>
    %57 = arith.mulf %56, %55 : vector<16x512xf32>
    %cst_22 = arith.constant 5.000000e-01 : f32
    %58 = vector.broadcast %cst_22 : f32 to vector<16x512xf32>
    %59 = arith.addf %57, %58 : vector<16x512xf32>
    %60 = arith.truncf %59 : vector<16x512xf32> to vector<16x512xbf16>
    %c0_23 = arith.constant 0 : index
    %c0_24 = arith.constant 0 : index
    %61 = vector.load %arg6[%c0_23, %c0_24] : memref<512x256xbf16, #tpu.memory_space<vmem>>, vector<512x256xbf16>
    %cst_25 = arith.constant dense<0.000000e+00> : vector<16x256xf32>
    %62 = tpu.matmul %60, %61, %cst_25 {dimension_numbers = #tpu.dot_dimension_numbers<[1], [0], [0], [1], [0, 0, 1, 1], [], []>} : vector<16x512xbf16>, vector<512x256xbf16>, vector<16x256xf32> -> vector<16x256xf32>
    %63 = vector.broadcast %2 : vector<1x256xf32> to vector<16x256xf32>
    %64 = arith.addf %62, %63 : vector<16x256xf32>
    %cst_26 = arith.constant 5.000000e-01 : f32
    %65 = vector.broadcast %cst_26 : f32 to vector<16x256xf32>
    %66 = arith.mulf %65, %64 : vector<16x256xf32>
    %67 = math.tanh %66 : vector<16x256xf32>
    %cst_27 = arith.constant 5.000000e-01 : f32
    %68 = vector.broadcast %cst_27 : f32 to vector<16x256xf32>
    %69 = arith.mulf %68, %67 : vector<16x256xf32>
    %cst_28 = arith.constant 5.000000e-01 : f32
    %70 = vector.broadcast %cst_28 : f32 to vector<16x256xf32>
    %71 = arith.addf %69, %70 : vector<16x256xf32>
    %72 = arith.truncf %71 : vector<16x256xf32> to vector<16x256xbf16>
    %c0_29 = arith.constant 0 : index
    %c0_30 = arith.constant 0 : index
    %73 = vector.load %arg7[%c0_29, %c0_30] : memref<256x128xbf16, #tpu.memory_space<vmem>>, vector<256x128xbf16>
    %cst_31 = arith.constant dense<0.000000e+00> : vector<16x128xf32>
    %74 = tpu.matmul %72, %73, %cst_31 {dimension_numbers = #tpu.dot_dimension_numbers<[1], [0], [0], [1], [0, 0, 1, 1], [], []>} : vector<16x256xbf16>, vector<256x128xbf16>, vector<16x128xf32> -> vector<16x128xf32>
    %75 = vector.broadcast %3 : vector<1x128xf32> to vector<16x128xf32>
    %76 = arith.addf %74, %75 : vector<16x128xf32>
    %77 = vector.extract_strided_slice %76 {offsets = [0, 0], sizes = [16, 1], strides = [1, 1]} : vector<16x128xf32> to vector<16x1xf32>
    %cst_32 = arith.constant 5.000000e-01 : f32
    %78 = vector.broadcast %cst_32 : f32 to vector<16x1xf32>
    %79 = arith.mulf %78, %77 : vector<16x1xf32>
    %80 = math.tanh %79 : vector<16x1xf32>
    %cst_33 = arith.constant 5.000000e-01 : f32
    %81 = vector.broadcast %cst_33 : f32 to vector<16x1xf32>
    %82 = arith.mulf %81, %80 : vector<16x1xf32>
    %cst_34 = arith.constant 5.000000e-01 : f32
    %83 = vector.broadcast %cst_34 : f32 to vector<16x1xf32>
    %84 = arith.addf %82, %83 : vector<16x1xf32>
    %85 = vector.extract_strided_slice %76 {offsets = [0, 1], sizes = [16, 10], strides = [1, 1]} : vector<16x128xf32> to vector<16x10xf32>
    %cst_35 = arith.constant 0.000000e+00 : f32
    %86 = vector.broadcast %cst_35 : f32 to vector<16x10xf32>
    %87 = arith.maximumf %85, %86 : vector<16x10xf32>
    %88 = vector.broadcast %5 : vector<1x10xf32> to vector<16x10xf32>
    %89 = arith.mulf %87, %88 : vector<16x10xf32>
    %cst_36 = arith.constant dense<0.000000e+00> : vector<16xf32>
    %90 = vector.multi_reduction <add>, %89, %cst_36 [1] : vector<16x10xf32> to vector<16xf32>
    %91 = vector.shape_cast %90 : vector<16xf32> to vector<16x1xf32>
    %92 = vector.broadcast %8 : vector<1x1xf32> to vector<16x1xf32>
    %93 = arith.addf %91, %92 : vector<16x1xf32>
    %94 = vector.broadcast %6 : vector<1x10xf32> to vector<16x10xf32>
    %95 = arith.mulf %87, %94 : vector<16x10xf32>
    %cst_37 = arith.constant dense<0.000000e+00> : vector<16xf32>
    %96 = vector.multi_reduction <add>, %95, %cst_37 [1] : vector<16x10xf32> to vector<16xf32>
    %97 = vector.shape_cast %96 : vector<16xf32> to vector<16x1xf32>
    %98 = vector.broadcast %9 : vector<1x1xf32> to vector<16x1xf32>
    %99 = arith.addf %97, %98 : vector<16x1xf32>
    %100 = tpu.iota {dimensions = array<i32: 1>} : vector<16x128xi32>
    %c0_i32 = arith.constant 0 : i32
    %101 = vector.broadcast %c0_i32 : i32 to vector<16x128xi32>
    %102 = arith.cmpi eq, %100, %101 : vector<16x128xi32>
    %c1_i32 = arith.constant 1 : i32
    %103 = vector.broadcast %c1_i32 : i32 to vector<16x128xi32>
    %104 = arith.cmpi eq, %100, %103 : vector<16x128xi32>
    %c2_i32 = arith.constant 2 : i32
    %105 = vector.broadcast %c2_i32 : i32 to vector<16x128xi32>
    %106 = arith.cmpi eq, %100, %105 : vector<16x128xi32>
    %cst_38 = arith.constant 0.000000e+00 : f32
    %107 = vector.shape_cast %99 : vector<16x1xf32> to vector<16x1xf32>
    %108 = vector.broadcast %107 : vector<16x1xf32> to vector<16x128xf32>
    %109 = vector.broadcast %cst_38 : f32 to vector<16x128xf32>
    %110 = arith.select %106, %108, %109 : vector<16x128xi1>, vector<16x128xf32>
    %111 = vector.shape_cast %93 : vector<16x1xf32> to vector<16x1xf32>
    %112 = vector.broadcast %111 : vector<16x1xf32> to vector<16x128xf32>
    %113 = arith.select %104, %112, %110 : vector<16x128xi1>, vector<16x128xf32>
    %114 = vector.shape_cast %84 : vector<16x1xf32> to vector<16x1xf32>
    %115 = vector.broadcast %114 : vector<16x1xf32> to vector<16x128xf32>
    %116 = arith.select %102, %115, %113 : vector<16x128xi1>, vector<16x128xf32>
    %c0_39 = arith.constant 0 : index
    %c0_40 = arith.constant 0 : index
    %117 = vector.load %arg9[%c0_39, %c0_40] : memref<16x128xf32, #tpu.memory_space<vmem>>, vector<16x128xf32>
    tpu.vector_store %arg9[%c0_39, %c0_40], %116 {strides = array<i32>} : memref<16x128xf32, #tpu.memory_space<vmem>>, vector<16x128xf32>,
    return
  }
  func.func @transform_0(%arg0: i32) -> (i32, i32) {
    %c0_i32 = arith.constant 0 : i32
    %c0_i32_0 = arith.constant 0 : i32
    return %arg0, %c0_i32 : i32, i32
  }
  func.func @transform_1(%arg0: i32) -> (i32, i32) {
    %c0_i32 = arith.constant 0 : i32
    %c0_i32_0 = arith.constant 0 : i32
    return %arg0, %c0_i32 : i32, i32
  }
  func.func @transform_2(%arg0: i32) -> (i32, i32) {
    %c0_i32 = arith.constant 0 : i32
    %c0_i32_0 = arith.constant 0 : i32
    return %arg0, %c0_i32 : i32, i32
  }
  func.func @transform_3(%arg0: i32) -> (i32, i32) {
    %c0_i32 = arith.constant 0 : i32
    %c0_i32_0 = arith.constant 0 : i32
    %c0_i32_1 = arith.constant 0 : i32
    return %c0_i32, %c0_i32_0 : i32, i32
  }
  func.func @transform_4(%arg0: i32) -> (i32, i32) {
    %c0_i32 = arith.constant 0 : i32
    %c0_i32_0 = arith.constant 0 : i32
    %c0_i32_1 = arith.constant 0 : i32
    return %c0_i32, %c0_i32_0 : i32, i32
  }
  func.func @transform_5(%arg0: i32) -> (i32, i32) {
    %c0_i32 = arith.constant 0 : i32
    %c0_i32_0 = arith.constant 0 : i32
    %c0_i32_1 = arith.constant 0 : i32
    return %c0_i32, %c0_i32_0 : i32, i32
  }
  func.func @transform_6(%arg0: i32) -> (i32, i32) {
    %c0_i32 = arith.constant 0 : i32
    %c0_i32_0 = arith.constant 0 : i32
    %c0_i32_1 = arith.constant 0 : i32
    return %c0_i32, %c0_i32_0 : i32, i32
  }
  func.func @transform_7(%arg0: i32) -> (i32, i32) {
    %c0_i32 = arith.constant 0 : i32
    %c0_i32_0 = arith.constant 0 : i32
    %c0_i32_1 = arith.constant 0 : i32
    return %c0_i32, %c0_i32_0 : i32, i32
  }
  func.func @transform_8(%arg0: i32) -> (i32, i32) {
    %c0_i32 = arith.constant 0 : i32
    %c0_i32_0 = arith.constant 0 : i32
    return %arg0, %c0_i32 : i32, i32
  }
}

</mosaic_0001>

<llo_original>
// kernel: net_forward.1
$region0: #{net_forward.1}
  #allocation0 [shape = 'u32[]', space=smem, size = 0x4, offset = 0x4, fixed_abs, tag = 'smem constant byte address 0x4 - core index']
  #allocation1 [shape = 'u32[144,128]{1,0:T(1,128)}', space=vmem, size = 0x12000, scoped, tag = 'internal scratch']
  %s0 = inlined_call_operand.vmem [shape: bf16[32,32], index: 0, kind: input, shape index: {}]
  %s1 = inlined_call_operand.vmem [shape: bf16[32,32], index: 1, kind: input, shape index: {}]
  %s2 = inlined_call_operand.vmem [shape: bf16[32,128], index: 2, kind: input, shape index: {}]
  %s3 = inlined_call_operand.hbm [shape: bf16[32,128], index: 3, kind: input, shape index: {}]
  %s4 = inlined_call_operand.vmem [shape: bf16[128,512], index: 4, kind: input, shape index: {}]
  %s5 = inlined_call_operand.hbm [shape: bf16[512,256], index: 5, kind: input, shape index: {}]
  %s6 = inlined_call_operand.vmem [shape: bf16[256,128], index: 6, kind: input, shape index: {}]
  %s7 = inlined_call_operand.hbm [shape: f32[8,512], index: 7, kind: input, shape index: {}]
  %s8 = inlined_call_operand.vmem [shape: f32[32,128], index: 8, kind: output, shape index: {}]
  %s9 = sld [smem:[#allocation0]]
  $region77: #{net_forward.1} parent=0
    _
  %s11 = ssub.s32 1, %s9
  %s12 = scalar_select 0, %s11, %s9
  $region1: #{net_forward.1} parent=0
    #allocation2 [shape = 'u8[8192]{0}', space=vmem, size = 0x2000, scoped, tag = 'input window, operand 3, single buffered']
    #allocation3 [shape = 's32[2]{0}', space=sflag, size = 0x8, scoped, tag = 'scoped memory for net_forward.1']
    #allocation4 [shape = 'u8[262144]{0}', space=vmem, size = 0x40000, scoped, tag = 'input window, operand 5, single buffered']
    #allocation5 [shape = 's32[1]{0}', space=sflag, size = 0x4, scoped, tag = 'scoped memory for net_forward.1']
    #allocation6 [shape = 'u8[16384]{0}', space=vmem, size = 0x4000, scoped, tag = 'input window, operand 7, single buffered']
    %13 = vsyncpa [#allocation3], 0
    %14 = vsyncpa [#allocation5], 0
    loop: start=0, step=1, limit=4
    $region2: #{net_forward.1} parent=1 // loop_pre_header
      _
    $region3: #{net_forward.1} parent=1 // loop_header
      %s16 = sphi 0, %s20
      %p17 = scmp.ge.s32.totalorder %s16, 4
      %s26 = sphi 0, %s28
      %s29 = sphi 0, %s26
      %s30 = sphi 0, %s29
      %s46 = sphi 0, %s30
      %s52 = sphi 0, %s54
      %s55 = sphi 0, %s52
      %s56 = sphi 0, %s55
      %s72 = sphi 0, %s56
      %s78 = sphi 0, %s80
      %s81 = sphi 0, %s78
      %s82 = sphi 0, %s81
      %s98 = sphi 0, %s82
      %s102 = sphi 0, %s102
      %s104 = sphi 0, %s102
      %s105 = sphi 0, %s104
      %s119 = sphi 0, %s105
      %s123 = sphi 0, %s123
      %s125 = sphi 0, %s123
      %s126 = sphi 0, %s125
      %s140 = sphi 0, %s126
      %s144 = sphi 0, %s144
      %s146 = sphi 0, %s144
      %s147 = sphi 0, %s146
      %s161 = sphi 0, %s147
      %s165 = sphi 0, %s165
      %s167 = sphi 0, %s165
      %s168 = sphi 0, %s167
      %s182 = sphi 0, %s168
      %s186 = sphi 0, %s186
      %s188 = sphi 0, %s186
      %s189 = sphi 0, %s188
      %s203 = sphi 0, %s189
      %s209 = sphi 0, %s211
      %s212 = sphi 0, %s209
      %s213 = sphi 0, %s212
      %s229 = sphi 0, %s213
    $region4: #{net_forward.1} parent=1 // loop_header_branch
      %19 = sbr.rel (%p17) target = $region8
    $region5: #{net_forward.1} parent=1 // loop_body
      %s21 = ssub.s32 %s16, 1
      %s22 = ssub.s32 %s16, 2
      %s23 = sadd.s32 %s16, 1
      %s24 = ssub.s32 %s16, %s23
      %p25 = scmp.eq.s32.totalorder %s24, 0
      %s27 = sadd.s32 %s26, 1
      %s28 = scalar_select %p25, %s26, %s27
      %p31 = pneg %p25
      %p32 = scmp.eq.s32.totalorder %s16, 1
      %p33 = por %p31, %p32
      %p34 = scmp.ne.s32.totalorder %s26, %s29
      %p35 = scmp.eq.s32.totalorder %s16, 0
      %p36 = por %p34, %p35
      %p37 = scmp.ne.s32.totalorder %s26, %s29
      %p38 = scmp.eq.s32.totalorder %s21, 1
      %p39 = por %p37, %p38
      %p40 = scmp.ne.s32.totalorder %s29, %s30
      %p41 = scmp.eq.s32.totalorder %s21, 0
      %p42 = por %p40, %p41
      %p43 = scmp.ne.s32.totalorder %s29, %s30
      %p44 = scmp.eq.s32.totalorder %s22, 1
      %p45 = por %p43, %p44
      %p47 = scmp.ne.s32.totalorder %s30, %s46
      %p48 = scmp.eq.s32.totalorder %s22, 0
      %p49 = por %p47, %p48
      %s50 = ssub.s32 %s16, %s23
      %p51 = scmp.eq.s32.totalorder %s50, 0
      %s53 = sadd.s32 %s52, 1
      %s54 = scalar_select %p51, %s52, %s53
      %p57 = pneg %p51
      %p58 = scmp.eq.s32.totalorder %s16, 1
      %p59 = por %p57, %p58
      %p60 = scmp.ne.s32.totalorder %s52, %s55
      %p61 = scmp.eq.s32.totalorder %s16, 0
      %p62 = por %p60, %p61
      %p63 = scmp.ne.s32.totalorder %s52, %s55
      %p64 = scmp.eq.s32.totalorder %s21, 1
      %p65 = por %p63, %p64
      %p66 = scmp.ne.s32.totalorder %s55, %s56
      %p67 = scmp.eq.s32.totalorder %s21, 0
      %p68 = por %p66, %p67
      %p69 = scmp.ne.s32.totalorder %s55, %s56
      %p70 = scmp.eq.s32.totalorder %s22, 1
      %p71 = por %p69, %p70
      %p73 = scmp.ne.s32.totalorder %s56, %s72
      %p74 = scmp.eq.s32.totalorder %s22, 0
      %p75 = por %p73, %p74
      %s76 = ssub.s32 %s16, %s23
      %p77 = scmp.eq.s32.totalorder %s76, 0
      %s79 = sadd.s32 %s78, 1
      %s80 = scalar_select %p77, %s78, %s79
      %p83 = pneg %p77
      %p84 = scmp.eq.s32.totalorder %s16, 1
      %p85 = por %p83, %p84
      %p86 = scmp.ne.s32.totalorder %s78, %s81
      %p87 = scmp.eq.s32.totalorder %s16, 0
      %p88 = por %p86, %p87
      %p89 = scmp.ne.s32.totalorder %s78, %s81
      %p90 = scmp.eq.s32.totalorder %s21, 1
      %p91 = por %p89, %p90
      %p92 = scmp.ne.s32.totalorder %s81, %s82
      %p93 = scmp.eq.s32.totalorder %s21, 0
      %p94 = por %p92, %p93
      %p95 = scmp.ne.s32.totalorder %s81, %s82
      %p96 = scmp.eq.s32.totalorder %s22, 1
      %p97 = por %p95, %p96
      %p99 = scmp.ne.s32.totalorder %s82, %s98
      %p100 = scmp.eq.s32.totalorder %s22, 0
      %p101 = por %p99, %p100
      %s103 = sadd.s32 %s102, 1
      %p106 = scmp.eq.s32.totalorder %s16, 1
      %p107 = scmp.ne.s32.totalorder %s102, %s104
      %p108 = scmp.eq.s32.totalorder %s16, 0
      %p109 = por %p107, %p108
      %p110 = scmp.ne.s32.totalorder %s102, %s104
      %p111 = scmp.eq.s32.totalorder %s21, 1
      %p112 = por %p110, %p111
      %p113 = scmp.ne.s32.totalorder %s104, %s105
      %p114 = scmp.eq.s32.totalorder %s21, 0
      %p115 = por %p113, %p114
      %p116 = scmp.ne.s32.totalorder %s104, %s105
      %p117 = scmp.eq.s32.totalorder %s22, 1
      %p118 = por %p116, %p117
      %p120 = scmp.ne.s32.totalorder %s105, %s119
      %p121 = scmp.eq.s32.totalorder %s22, 0
      %p122 = por %p120, %p121
      %s124 = sadd.s32 %s123, 1
      %p127 = scmp.eq.s32.totalorder %s16, 1
      %p128 = scmp.ne.s32.totalorder %s123, %s125
      %p129 = scmp.eq.s32.totalorder %s16, 0
      %p130 = por %p128, %p129
      %p131 = scmp.ne.s32.totalorder %s123, %s125
      %p132 = scmp.eq.s32.totalorder %s21, 1
      %p133 = por %p131, %p132
      %p134 = scmp.ne.s32.totalorder %s125, %s126
      %p135 = scmp.eq.s32.totalorder %s21, 0
      %p136 = por %p134, %p135
      %p137 = scmp.ne.s32.totalorder %s125, %s126
      %p138 = scmp.eq.s32.totalorder %s22, 1
      %p139 = por %p137, %p138
      %p141 = scmp.ne.s32.totalorder %s126, %s140
      %p142 = scmp.eq.s32.totalorder %s22, 0
      %p143 = por %p141, %p142
      %s145 = sadd.s32 %s144, 1
      %p148 = scmp.eq.s32.totalorder %s16, 1
      %p149 = scmp.ne.s32.totalorder %s144, %s146
      %p150 = scmp.eq.s32.totalorder %s16, 0
      %p151 = por %p149, %p150
      %p152 = scmp.ne.s32.totalorder %s144, %s146
      %p153 = scmp.eq.s32.totalorder %s21, 1
      %p154 = por %p152, %p153
      %p155 = scmp.ne.s32.totalorder %s146, %s147
      %p156 = scmp.eq.s32.totalorder %s21, 0
      %p157 = por %p155, %p156
      %p158 = scmp.ne.s32.totalorder %s146, %s147
      %p159 = scmp.eq.s32.totalorder %s22, 1
      %p160 = por %p158, %p159
      %p162 = scmp.ne.s32.totalorder %s147, %s161
      %p163 = scmp.eq.s32.totalorder %s22, 0
      %p164 = por %p162, %p163
      %s166 = sadd.s32 %s165, 1
      %p169 = scmp.eq.s32.totalorder %s16, 1
      %p170 = scmp.ne.s32.totalorder %s165, %s167
      %p171 = scmp.eq.s32.totalorder %s16, 0
      %p172 = por %p170, %p171
      %p173 = scmp.ne.s32.totalorder %s165, %s167
      %p174 = scmp.eq.s32.totalorder %s21, 1
      %p175 = por %p173, %p174
      %p176 = scmp.ne.s32.totalorder %s167, %s168
      %p177 = scmp.eq.s32.totalorder %s21, 0
      %p178 = por %p176, %p177
      %p179 = scmp.ne.s32.totalorder %s167, %s168
      %p180 = scmp.eq.s32.totalorder %s22, 1
      %p181 = por %p179, %p180
      %p183 = scmp.ne.s32.totalorder %s168, %s182
      %p184 = scmp.eq.s32.totalorder %s22, 0
      %p185 = por %p183, %p184
      %s187 = sadd.s32 %s186, 1
      %p190 = scmp.eq.s32.totalorder %s16, 1
      %p191 = scmp.ne.s32.totalorder %s186, %s188
      %p192 = scmp.eq.s32.totalorder %s16, 0
      %p193 = por %p191, %p192
      %p194 = scmp.ne.s32.totalorder %s186, %s188
      %p195 = scmp.eq.s32.totalorder %s21, 1
      %p196 = por %p194, %p195
      %p197 = scmp.ne.s32.totalorder %s188, %s189
      %p198 = scmp.eq.s32.totalorder %s21, 0
      %p199 = por %p197, %p198
      %p200 = scmp.ne.s32.totalorder %s188, %s189
      %p201 = scmp.eq.s32.totalorder %s22, 1
      %p202 = por %p200, %p201
      %p204 = scmp.ne.s32.totalorder %s189, %s203
      %p205 = scmp.eq.s32.totalorder %s22, 0
      %p206 = por %p204, %p205
      %s207 = ssub.s32 %s16, %s23
      %p208 = scmp.eq.s32.totalorder %s207, 0
      %s210 = sadd.s32 %s209, 1
      %s211 = scalar_select %p208, %s209, %s210
      %p214 = pneg %p208
      %p215 = scmp.eq.s32.totalorder %s16, 1
      %p216 = por %p214, %p215
      %p217 = scmp.ne.s32.totalorder %s209, %s212
      %p218 = scmp.eq.s32.totalorder %s16, 0
      %p219 = por %p217, %p218
      %p220 = scmp.ne.s32.totalorder %s209, %s212
      %p221 = scmp.eq.s32.totalorder %s21, 1
      %p222 = por %p220, %p221
      %p223 = scmp.ne.s32.totalorder %s212, %s213
      %p224 = scmp.eq.s32.totalorder %s21, 0
      %p225 = por %p223, %p224
      %p226 = scmp.ne.s32.totalorder %s212, %s213
      %p227 = scmp.eq.s32.totalorder %s22, 1
      %p228 = por %p226, %p227
      %p230 = scmp.ne.s32.totalorder %s213, %s229
      %p231 = scmp.eq.s32.totalorder %s22, 0
      %p232 = por %p230, %p231
      %p233 = scmp.le.s32.totalorder 1, %s16
      %p234 = scmp.lt.s32.totalorder %s16, 3
      %p235 = pnand %p233, %p234
      %p236 = pneg %p235
      // Predicated region
      $region9: #{net_forward.1} parent=5 // pred_check
        _
      $region10: #{net_forward.1} parent=5 // pred_check_branch
        %238 = sbr.rel (%p235) target = $region12
      $region11: #{net_forward.1} parent=5 // pred_region
        %s239 = ssub.s32 %s16, 1
        // Predicated region
        $region13: #{net_forward.1} parent=11 // pred_check
          %p240 = pneg %p115
        $region14: #{net_forward.1} parent=11 // pred_check_branch
          %242 = sbr.rel (%p240) target = $region16
        $region15: #{net_forward.1} parent=11 // pred_region
          %s244 = ssub.s32 256, 256
          %245 = vsyncadd [#allocation3], %s244
          %s246 = sshll.u32 [#allocation2], 4
          %s247 = int_to_ptr.vmem [resolvable:$true] %s246
          %252 = dma.hbm_to_vmem [thread:$0]  %s3, 256, %s247, [#allocation3], 64, 64, 4
        $region16: #{net_forward.1} parent=11 // pred_fallthru
          _
        // Predicated region
        $region17: #{net_forward.1} parent=11 // pred_check
          %p253 = pneg %p136
        $region18: #{net_forward.1} parent=11 // pred_check_branch
          %255 = sbr.rel (%p253) target = $region20
        $region19: #{net_forward.1} parent=11 // pred_region
          _
        $region20: #{net_forward.1} parent=11 // pred_fallthru
          _
        // Predicated region
        $region21: #{net_forward.1} parent=11 // pred_check
          %p256 = pneg %p157
        $region22: #{net_forward.1} parent=11 // pred_check_branch
          %258 = sbr.rel (%p256) target = $region24
        $region23: #{net_forward.1} parent=11 // pred_region
          %s260 = ssub.s32 8192, 8192
          %261 = vsyncadd [#allocation5], %s260
          %s262 = sshll.u32 [#allocation4], 4
          %s263 = int_to_ptr.vmem [resolvable:$true] %s262
          %268 = dma.hbm_to_vmem [thread:$0]  %s5, 8192, %s263, [#allocation5], 128, 128, 8
        $region24: #{net_forward.1} parent=11 // pred_fallthru
          _
        // Predicated region
        $region25: #{net_forward.1} parent=11 // pred_check
          %p269 = pneg %p178
        $region26: #{net_forward.1} parent=11 // pred_check_branch
          %271 = sbr.rel (%p269) target = $region28
        $region27: #{net_forward.1} parent=11 // pred_region
          _
        $region28: #{net_forward.1} parent=11 // pred_fallthru
          _
        // Predicated region
        $region29: #{net_forward.1} parent=11 // pred_check
          %p272 = pneg %p199
        $region30: #{net_forward.1} parent=11 // pred_check_branch
          %274 = sbr.rel (%p272) target = $region32
        $region31: #{net_forward.1} parent=11 // pred_region
          %s276 = ssub.s32 512, 512
          %277 = vsyncadd [#allocation5], %s276
          %s279 = sshll.u32 [#allocation6], 4
          %s280 = int_to_ptr.vmem [resolvable:$true] %s279
          %282 = dma.hbm_to_vmem [thread:$0]  %s7, 512, %s280, [#allocation5]
        $region32: #{net_forward.1} parent=11 // pred_fallthru
          _
      $region12: #{net_forward.1} parent=5 // pred_fallthru
        _
      %p283 = scmp.lt.s32.totalorder %s16, 2
      // Predicated region
      $region33: #{net_forward.1} parent=5 // pred_check
        %p284 = pneg %p283
      $region34: #{net_forward.1} parent=5 // pred_check_branch
        %286 = sbr.rel (%p284) target = $region36
      $region35: #{net_forward.1} parent=5 // pred_region
        // Predicated region
        $region37: #{net_forward.1} parent=35 // pred_check
          %p287 = pneg %p36
        $region38: #{net_forward.1} parent=35 // pred_check_branch
          %289 = sbr.rel (%p287) target = $region40
        $region39: #{net_forward.1} parent=35 // pred_region
          %s290 = smul.u32 2, %s16
          %p291 = scmp.lt.s32.totalorder %s290, 3
          %s292 = scalar_select %p291, %s290, 3
          %s293 = smul.addr %s292, 4
          %s294 = scalar_lea.vmem %s0, %s293
          %s295 = smul.u32 2, %s16
        $region40: #{net_forward.1} parent=35 // pred_fallthru
          _
        // Predicated region
        $region41: #{net_forward.1} parent=35 // pred_check
          %p296 = pneg %p62
        $region42: #{net_forward.1} parent=35 // pred_check_branch
          %298 = sbr.rel (%p296) target = $region44
        $region43: #{net_forward.1} parent=35 // pred_region
          %s299 = smul.u32 2, %s16
          %p300 = scmp.lt.s32.totalorder %s299, 3
          %s301 = scalar_select %p300, %s299, 3
          %s302 = smul.addr %s301, 4
          %s303 = scalar_lea.vmem %s1, %s302
          %s304 = smul.u32 2, %s16
        $region44: #{net_forward.1} parent=35 // pred_fallthru
          _
        // Predicated region
        $region45: #{net_forward.1} parent=35 // pred_check
          %p305 = pneg %p88
        $region46: #{net_forward.1} parent=35 // pred_check_branch
          %307 = sbr.rel (%p305) target = $region48
        $region47: #{net_forward.1} parent=35 // pred_region
          %s308 = smul.u32 2, %s16
          %p309 = scmp.lt.s32.totalorder %s308, 3
          %s310 = scalar_select %p309, %s308, 3
          %s311 = smul.addr %s310, 4
          %s312 = scalar_lea.vmem %s2, %s311
          %s313 = smul.u32 2, %s16
        $region48: #{net_forward.1} parent=35 // pred_fallthru
          _
      $region36: #{net_forward.1} parent=5 // pred_fallthru
        _
      %p314 = scmp.le.s32.totalorder 1, %s16
      %p315 = scmp.lt.s32.totalorder %s16, 3
      %p316 = pnand %p314, %p315
      %p317 = pneg %p316
      // Predicated region
      $region49: #{net_forward.1} parent=5 // pred_check
        _
      $region50: #{net_forward.1} parent=5 // pred_check_branch
        %319 = sbr.rel (%p316) target = $region52
      $region51: #{net_forward.1} parent=5 // pred_region
        %s320 = ssub.s32 %s16, 1
        // Predicated region
        $region53: #{net_forward.1} parent=51 // pred_check
          %p321 = pneg %p115
        $region54: #{net_forward.1} parent=51 // pred_check_branch
          %323 = sbr.rel (%p321) target = $region56
        $region55: #{net_forward.1} parent=51 // pred_region
          %324 = dma.done [#allocation3], 256
        $region56: #{net_forward.1} parent=51 // pred_fallthru
          _
        // Predicated region
        $region57: #{net_forward.1} parent=51 // pred_check
          %p325 = pneg %p157
        $region58: #{net_forward.1} parent=51 // pred_check_branch
          %327 = sbr.rel (%p325) target = $region60
        $region59: #{net_forward.1} parent=51 // pred_region
          %328 = dma.done [#allocation5], 8192
        $region60: #{net_forward.1} parent=51 // pred_fallthru
          _
        // Predicated region
        $region61: #{net_forward.1} parent=51 // pred_check
          %p329 = pneg %p199
        $region62: #{net_forward.1} parent=51 // pred_check_branch
          %331 = sbr.rel (%p329) target = $region64
        $region63: #{net_forward.1} parent=51 // pred_region
          %332 = dma.done [#allocation5], 512
        $region64: #{net_forward.1} parent=51 // pred_fallthru
          _
        %s333 = smul.u32 2, %s21
        %p334 = scmp.lt.s32.totalorder %s333, 3
        %s335 = scalar_select %p334, %s333, 3
        %s336 = smul.addr %s335, 4
        %s337 = scalar_lea.vmem %s0, %s336
        %p338 = pneg %p42
        %p339 = pneg %p39
        %s340 = smul.u32 2, %s21
        %p341 = scmp.lt.s32.totalorder %s340, 3
        %s342 = scalar_select %p341, %s340, 3
        %s343 = smul.addr %s342, 4
        %s344 = scalar_lea.vmem %s1, %s343
        %p345 = pneg %p68
        %p346 = pneg %p65
        %s347 = smul.u32 2, %s21
        %p348 = scmp.lt.s32.totalorder %s347, 3
        %s349 = scalar_select %p348, %s347, 3
        %s350 = smul.addr %s349, 4
        %s351 = scalar_lea.vmem %s2, %s350
        %p352 = pneg %p94
        %p353 = pneg %p91
        %p354 = pneg %p115
        %p355 = pneg %p112
        %p356 = pneg %p136
        %p357 = pneg %p133
        %p358 = pneg %p157
        %p359 = pneg %p154
        %p360 = pneg %p178
        %p361 = pneg %p175
        %p362 = pneg %p199
        %p363 = pneg %p196
        %p364 = pneg %p225
        %p365 = pneg %p222
        %s366 = smul.u32 2, %s21
        %p367 = scmp.lt.s32.totalorder %s366, 3
        %s368 = scalar_select %p367, %s366, 3
        %s369 = smul.addr %s368, 8
        %s370 = scalar_lea.vmem %s8, %s369
        %s371 = smul.u32 2, %s21
        %p372 = scmp.lt.s32.totalorder %s371, 3
        %s373 = scalar_select %p372, %s371, 3
        %s374 = smul.addr %s373, 4
        %s375 = scalar_lea.vmem %s0, %s374
        %s376 = smul.u32 2, %s21
        %s377 = smul.u32 2, %s21
        %p378 = scmp.lt.s32.totalorder %s377, 3
        %s379 = scalar_select %p378, %s377, 3
        %s380 = smul.addr %s379, 4
        %s381 = scalar_lea.vmem %s1, %s380
        %s382 = smul.u32 2, %s21
        %s383 = smul.u32 2, %s21
        %p384 = scmp.lt.s32.totalorder %s383, 3
        %s385 = scalar_select %p384, %s383, 3
        %s386 = smul.addr %s385, 4
        %s387 = scalar_lea.vmem %s2, %s386
        %s388 = smul.u32 2, %s21
        %s389 = smul.u32 2, %s21
        %p390 = scmp.lt.s32.totalorder %s389, 3
        %s391 = scalar_select %p390, %s389, 3
        %s392 = smul.addr %s391, 8
        %s393 = scalar_lea.vmem %s8, %s392
        %s394 = smul.u32 2, %s21
        %v396 = vld [vmem:[#allocation6] sm:$0xff]
        %v397 = vld [vmem:[#allocation6 + $0x8] sm:$0xff]
        %v398 = vld [vmem:[#allocation6 + $0x10] sm:$0xff]
        %v399 = vld [vmem:[#allocation6 + $0x18] sm:$0xff]
        %v400 = vld [vmem:[%s375] sm:$0xf]
        %v401 = vld [vmem:[%s375 + $0x4] sm:$0xf]
        %v402 = vunpack.c.l.bf16 %v400
        %v403 = vunpack.c.l.bf16 %v401
        %v404 = vld [vmem:[%s381] sm:$0xf]
        %v405 = vld [vmem:[%s381 + $0x4] sm:$0xf]
        %v406 = vunpack.c.l.bf16 %v404
        %v407 = vunpack.c.l.bf16 %v405
        %v408 = vpack.c.bf16 %v403, %v402
        %v409 = vpack.c.bf16 %v407, %v406
        %v410 = vld [vmem:[#allocation2] sm:$0xf]
        %v411 = vld [vmem:[#allocation2 + $0x4] sm:$0xf]
        %v412 = vld [vmem:[#allocation2 + $0x8] sm:$0xf]
        %v413 = vld [vmem:[#allocation2 + $0xc] sm:$0xf]
        %v418 = vunpack.c.l.b16 %v410
        %v419 = vunpack.c.l.b16 %v411
        %v420 = vunpack.c.l.b16 %v412
        %v421 = vunpack.c.l.b16 %v413
        %v422 = vpack.c.b16 %v419, %v418
        %v423 = vpack.c.b16 %v421, %v420
        %vm426 = vcmask 261120
        %v428 = vsel %vm426, %v408, 0
        %v431 = vsel %vm426, %v409, 0
        %433 = vmatprep.subr.bf16.mxu0 0
        %434 = vmatpush1.bf16.msra.mxu0 0
        %435 = vmatprep.subr.bf16.mxu0 0
        %436 = vmatpush1.bf16.msra.mxu0 0
        %437 = vmatprep.subr.bf16.mxu0 0
        %438 = vmatpush1.bf16.msra.mxu0 0
        %439 = vmatprep.subr.bf16.mxu0 0
        %440 = vmatpush1.bf16.msra.mxu0 0
        %441 = vmatprep.subr.bf16.mxu0 0
        %442 = vmatpush1.bf16.msra.mxu0 0
        %443 = vmatprep.subr.bf16.mxu0 0
        %444 = vmatpush1.bf16.msra.mxu0 0
        %445 = vmatprep.subr.bf16.mxu0 0
        %446 = vmatpush1.bf16.msra.mxu0 %v423
        %447 = vmatprep.subr.bf16.mxu0 0
        %448 = vmatpush1.bf16.msra.mxu0 %v422
        %449 = vmatprep.subr.bf16.mxu0 0
        %450 = vmatpush2.bf16.msra.mxu0 0
        %451 = vmatprep.subr.bf16.mxu0 0
        %452 = vmatpush2.bf16.msra.mxu0 0
        %453 = vmatprep.subr.bf16.mxu0 0
        %454 = vmatpush2.bf16.msra.mxu0 0
        %455 = vmatprep.subr.bf16.mxu0 0
        %456 = vmatpush2.bf16.msra.mxu0 0
        %457 = vmatprep.subr.bf16.mxu0 0
        %458 = vmatpush2.bf16.msra.mxu0 0
        %459 = vmatprep.subr.bf16.mxu0 0
        %460 = vmatpush2.bf16.msra.mxu0 0
        %461 = vmatprep.subr.bf16.mxu0 0
        %462 = vmatpush2.bf16.msra.mxu0 0
        %463 = vmatprep.subr.bf16.mxu0 0
        %464 = vmatpush2.bf16.msra.mxu0 0
        %465 = vmatprep.mubr.bf16.mxu0 0
        %466 = vmatmul.mubr.bf16.gmra.mxu0 %v428
        %v467 = vpop.f32.mrf.mxu0
        %v468 = vadd.f32 0.0, %v467
        %v469 = vpop.f32.mrf.mxu0
        %v470 = vpop.f32.mrf.mxu0
        %v471 = vadd.f32 0.0, %v470
        %v472 = vpop.f32.mrf.mxu0
        %473 = vmatprep.mubr.bf16.mxu0 0
        %474 = vmatmul.mubr.bf16.gmra.mxu0 %v431
        %v475 = vpop.f32.mrf.mxu0
        %v476 = vadd.f32 0.0, %v475
        %v477 = vpop.f32.mrf.mxu0
        %v478 = vpop.f32.mrf.mxu0
        %v479 = vadd.f32 0.0, %v478
        %v480 = vpop.f32.mrf.mxu0
        %481 = vdwg.mxu0
        %v482 = vmul.f32 %v468, 0.5
        %v483 = vmul.f32 %v471, 0.5
        %v484 = vmul.f32 %v476, 0.5
        %v485 = vmul.f32 %v479, 0.5
        %v486 = vtanh.pop %v482
        %v487 = vtanh.pop %v483
        %v488 = vtanh.pop %v484
        %v489 = vtanh.pop %v485
        %v490 = vmul.f32 %v486, 0.5
        %v491 = vmul.f32 %v487, 0.5
        %v492 = vmul.f32 %v488, 0.5
        %v493 = vmul.f32 %v489, 0.5
        %v494 = vadd.f32 %v490, 0.5
        %v495 = vadd.f32 %v491, 0.5
        %v496 = vadd.f32 %v492, 0.5
        %v497 = vadd.f32 %v493, 0.5
        %v498 = vlaneseq
        %v499 = vshrl.u32 %v498, 7
        %v500 = vsub.s32 3, %v499
        %v501 = vrot.slane %v396, %v500
        %v502 = vmul.f32 %v406, %v501
        %v503 = vmul.f32 %v407, %v501
        %v504 = vsel %vm426, %v502, 0.0
        %505 = vadd.xlane.f32.xlu0 %v504
        %v506 = vpop.xlane.xlu0 %505
        %v507 = vsel %vm426, %v503, 0.0
        %508 = vadd.xlane.f32.xlu0 %v507
        %v509 = vpop.xlane.xlu0 %508
        %v510 = vlaneseq
        %v511 = vshrl.u32 %v510, 7
        %v512 = vsub.s32 6, %v511
        %v513 = vrot.slane %v396, %v512
        %v514 = vadd.f32 %v506, %v513
        %v515 = vadd.f32 %v509, %v513
        %v516 = vmul.f32 %v514, 0.5
        %v517 = vmul.f32 %v515, 0.5
        %v518 = vtanh.pop %v516
        %v519 = vtanh.pop %v517
        %v520 = vmul.f32 %v518, 0.5
        %v521 = vmul.f32 %v519, 0.5
        %v522 = vadd.f32 %v520, 0.5
        %v523 = vadd.f32 %v521, 0.5
        %v524 = vmul.f32 %v522, 10.0
        %v525 = vmul.f32 %v523, 10.0
        %v526 = vsub.f32 %v494, %v496
        %v527 = vsub.f32 %v495, %v497
        %529 = vset.pattern.permute.xlu0 0
        %530 = vperm.xlu0 %529, %v524
        %v531 = vpop.permute.xlu0 %530
        %534 = vset.pattern.permute.xlu0 0
        %535 = vperm.xlu0 %534, %v525
        %v536 = vpop.permute.xlu0 %535
        %v538 = vmul.f32 %v531, %v526
        %v539 = vmul.f32 %v536, %v527
        %v540 = vld [vmem:[%s387] sm:$0xf]
        %v541 = vld [vmem:[%s387 + $0x4] sm:$0xf]
        %v542 = vunpack.c.l.bf16 %v540
        %v543 = vunpack.c.l.bf16 %v541
        %v544 = vmul.f32 %v538, %v542
        %v545 = vmul.f32 %v539, %v543
        %v546 = vpack.c.bf16 %v545, %v544
        %v547 = vld [vmem:[%s4] sm:$0xff]
        %v548 = vld [vmem:[%s4 + $0x8] sm:$0xff]
        %v549 = vld [vmem:[%s4 + $0x10] sm:$0xff]
        %v550 = vld [vmem:[%s4 + $0x18] sm:$0xff]
        %v551 = vld [vmem:[%s4 + $0x20] sm:$0xff]
        %v552 = vld [vmem:[%s4 + $0x28] sm:$0xff]
        %v553 = vld [vmem:[%s4 + $0x30] sm:$0xff]
        %v554 = vld [vmem:[%s4 + $0x38] sm:$0xff]
        %v555 = vld [vmem:[%s4 + $0x40] sm:$0xff]
        %v556 = vld [vmem:[%s4 + $0x48] sm:$0xff]
        %v557 = vld [vmem:[%s4 + $0x50] sm:$0xff]
        %v558 = vld [vmem:[%s4 + $0x58] sm:$0xff]
        %v559 = vld [vmem:[%s4 + $0x60] sm:$0xff]
        %v560 = vld [vmem:[%s4 + $0x68] sm:$0xff]
        %v561 = vld [vmem:[%s4 + $0x70] sm:$0xff]
        %v562 = vld [vmem:[%s4 + $0x78] sm:$0xff]
        %v563 = vld [vmem:[%s4 + $0x80] sm:$0xff]
        %v564 = vld [vmem:[%s4 + $0x88] sm:$0xff]
        %v565 = vld [vmem:[%s4 + $0x90] sm:$0xff]
        %v566 = vld [vmem:[%s4 + $0x98] sm:$0xff]
        %v567 = vld [vmem:[%s4 + $0xa0] sm:$0xff]
        %v568 = vld [vmem:[%s4 + $0xa8] sm:$0xff]
        %v569 = vld [vmem:[%s4 + $0xb0] sm:$0xff]
        %v570 = vld [vmem:[%s4 + $0xb8] sm:$0xff]
        %v571 = vld [vmem:[%s4 + $0xc0] sm:$0xff]
        %v572 = vld [vmem:[%s4 + $0xc8] sm:$0xff]
        %v573 = vld [vmem:[%s4 + $0xd0] sm:$0xff]
        %v574 = vld [vmem:[%s4 + $0xd8] sm:$0xff]
        %v575 = vld [vmem:[%s4 + $0xe0] sm:$0xff]
        %v576 = vld [vmem:[%s4 + $0xe8] sm:$0xff]
        %v577 = vld [vmem:[%s4 + $0xf0] sm:$0xff]
        %v578 = vld [vmem:[%s4 + $0xf8] sm:$0xff]
        %v579 = vlaneseq
        %v580 = vshrl.u32 %v579, 7
        %v581 = vsub.s32 0, %v580
        %v582 = vrot.slane %v396, %v581
        %v583 = vlaneseq
        %v584 = vshrl.u32 %v583, 7
        %v585 = vsub.s32 0, %v584
        %v586 = vrot.slane %v397, %v585
        %v587 = vlaneseq
        %v588 = vshrl.u32 %v587, 7
        %v589 = vsub.s32 0, %v588
        %v590 = vrot.slane %v398, %v589
        %v591 = vlaneseq
        %v592 = vshrl.u32 %v591, 7
        %v593 = vsub.s32 0, %v592
        %v594 = vrot.slane %v399, %v593
        %v627 = vunpack.c.l.b16 %v547
        %v628 = vunpack.c.h.b16 %v547
        %v629 = vunpack.c.l.b16 %v548
        %v630 = vunpack.c.h.b16 %v548
        %v631 = vunpack.c.l.b16 %v549
        %v632 = vunpack.c.h.b16 %v549
        %v633 = vunpack.c.l.b16 %v550
        %v634 = vunpack.c.h.b16 %v550
        %v635 = vunpack.c.l.b16 %v551
        %v636 = vunpack.c.h.b16 %v551
        %v637 = vunpack.c.l.b16 %v552
        %v638 = vunpack.c.h.b16 %v552
        %v639 = vunpack.c.l.b16 %v553
        %v640 = vunpack.c.h.b16 %v553
        %v641 = vunpack.c.l.b16 %v554
        %v642 = vunpack.c.h.b16 %v554
        %v643 = vunpack.c.l.b16 %v555
        %v644 = vunpack.c.h.b16 %v555
        %v645 = vunpack.c.l.b16 %v556
        %v646 = vunpack.c.h.b16 %v556
        %v647 = vunpack.c.l.b16 %v557
        %v648 = vunpack.c.h.b16 %v557
        %v649 = vunpack.c.l.b16 %v558
        %v650 = vunpack.c.h.b16 %v558
        %v651 = vunpack.c.l.b16 %v559
        %v652 = vunpack.c.h.b16 %v559
        %v653 = vunpack.c.l.b16 %v560
        %v654 = vunpack.c.h.b16 %v560
        %v655 = vunpack.c.l.b16 %v561
        %v656 = vunpack.c.h.b16 %v561
        %v657 = vunpack.c.l.b16 %v562
        %v658 = vunpack.c.h.b16 %v562
        %v659 = vunpack.c.l.b16 %v563
        %v660 = vunpack.c.h.b16 %v563
        %v661 = vunpack.c.l.b16 %v564
        %v662 = vunpack.c.h.b16 %v564
        %v663 = vunpack.c.l.b16 %v565
        %v664 = vunpack.c.h.b16 %v565
        %v665 = vunpack.c.l.b16 %v566
        %v666 = vunpack.c.h.b16 %v566
        %v667 = vunpack.c.l.b16 %v567
        %v668 = vunpack.c.h.b16 %v567
        %v669 = vunpack.c.l.b16 %v568
        %v670 = vunpack.c.h.b16 %v568
        %v671 = vunpack.c.l.b16 %v569
        %v672 = vunpack.c.h.b16 %v569
        %v673 = vunpack.c.l.b16 %v570
        %v674 = vunpack.c.h.b16 %v570
        %v675 = vunpack.c.l.b16 %v571
        %v676 = vunpack.c.h.b16 %v571
        %v677 = vunpack.c.l.b16 %v572
        %v678 = vunpack.c.h.b16 %v572
        %v679 = vunpack.c.l.b16 %v573
        %v680 = vunpack.c.h.b16 %v573
        %v681 = vunpack.c.l.b16 %v574
        %v682 = vunpack.c.h.b16 %v574
        %v683 = vunpack.c.l.b16 %v575
        %v684 = vunpack.c.h.b16 %v575
        %v685 = vunpack.c.l.b16 %v576
        %v686 = vunpack.c.h.b16 %v576
        %v687 = vunpack.c.l.b16 %v577
        %v688 = vunpack.c.h.b16 %v577
        %v689 = vunpack.c.l.b16 %v578
        %v690 = vunpack.c.h.b16 %v578
        %v691 = vpack.c.b16 %v631, %v627
        %v692 = vpack.c.b16 %v632, %v628
        %v693 = vpack.c.b16 %v633, %v629
        %v694 = vpack.c.b16 %v634, %v630
        %v695 = vpack.c.b16 %v639, %v635
        %v696 = vpack.c.b16 %v640, %v636
        %v697 = vpack.c.b16 %v641, %v637
        %v698 = vpack.c.b16 %v642, %v638
        %v699 = vpack.c.b16 %v647, %v643
        %v700 = vpack.c.b16 %v648, %v644
        %v701 = vpack.c.b16 %v649, %v645
        %v702 = vpack.c.b16 %v650, %v646
        %v703 = vpack.c.b16 %v655, %v651
        %v704 = vpack.c.b16 %v656, %v652
        %v705 = vpack.c.b16 %v657, %v653
        %v706 = vpack.c.b16 %v658, %v654
        %v707 = vpack.c.b16 %v663, %v659
        %v708 = vpack.c.b16 %v664, %v660
        %v709 = vpack.c.b16 %v665, %v661
        %v710 = vpack.c.b16 %v666, %v662
        %v711 = vpack.c.b16 %v671, %v667
        %v712 = vpack.c.b16 %v672, %v668
        %v713 = vpack.c.b16 %v673, %v669
        %v714 = vpack.c.b16 %v674, %v670
        %v715 = vpack.c.b16 %v679, %v675
        %v716 = vpack.c.b16 %v680, %v676
        %v717 = vpack.c.b16 %v681, %v677
        %v718 = vpack.c.b16 %v682, %v678
        %v719 = vpack.c.b16 %v687, %v683
        %v720 = vpack.c.b16 %v688, %v684
        %v721 = vpack.c.b16 %v689, %v685
        %v722 = vpack.c.b16 %v690, %v686
        %755 = vmatprep.subr.bf16.mxu0 %v720
        %756 = vmatpush1.bf16.msra.mxu0 %v719
        %757 = vmatprep.subr.bf16.mxu0 %v716
        %758 = vmatpush1.bf16.msra.mxu0 %v715
        %759 = vmatprep.subr.bf16.mxu0 %v712
        %760 = vmatpush1.bf16.msra.mxu0 %v711
        %761 = vmatprep.subr.bf16.mxu0 %v708
        %762 = vmatpush1.bf16.msra.mxu0 %v707
        %763 = vmatprep.subr.bf16.mxu0 %v704
        %764 = vmatpush1.bf16.msra.mxu0 %v703
        %765 = vmatprep.subr.bf16.mxu0 %v700
        %766 = vmatpush1.bf16.msra.mxu0 %v699
        %767 = vmatprep.subr.bf16.mxu0 %v696
        %768 = vmatpush1.bf16.msra.mxu0 %v695
        %769 = vmatprep.subr.bf16.mxu0 %v692
        %770 = vmatpush1.bf16.msra.mxu0 %v691
        %771 = vmatprep.subr.bf16.mxu0 0
        %772 = vmatpush2.bf16.msra.mxu0 0
        %773 = vmatprep.subr.bf16.mxu0 0
        %774 = vmatpush2.bf16.msra.mxu0 0
        %775 = vmatprep.subr.bf16.mxu0 0
        %776 = vmatpush2.bf16.msra.mxu0 0
        %777 = vmatprep.subr.bf16.mxu0 0
        %778 = vmatpush2.bf16.msra.mxu0 0
        %779 = vmatprep.subr.bf16.mxu0 0
        %780 = vmatpush2.bf16.msra.mxu0 0
        %781 = vmatprep.subr.bf16.mxu0 0
        %782 = vmatpush2.bf16.msra.mxu0 0
        %783 = vmatprep.subr.bf16.mxu0 0
        %784 = vmatpush2.bf16.msra.mxu0 0
        %785 = vmatprep.subr.bf16.mxu0 0
        %786 = vmatpush2.bf16.msra.mxu0 0
        %787 = vmatprep.mubr.bf16.mxu0 0
        %788 = vmatmul.mubr.bf16.gmra.mxu0 %v546
        %v789 = vpop.f32.mrf.mxu0
        %v790 = vadd.f32 %v582, %v789
        %v791 = vpop.f32.mrf.mxu0
        %v792 = vadd.f32 %v586, %v791
        %v793 = vpop.f32.mrf.mxu0
        %v794 = vadd.f32 %v582, %v793
        %v795 = vpop.f32.mrf.mxu0
        %v796 = vadd.f32 %v586, %v795
        %797 = vdwg.mxu0
        %798 = vmatprep.subr.bf16.mxu0 %v722
        %799 = vmatpush1.bf16.msra.mxu0 %v721
        %800 = vmatprep.subr.bf16.mxu0 %v718
        %801 = vmatpush1.bf16.msra.mxu0 %v717
        %802 = vmatprep.subr.bf16.mxu0 %v714
        %803 = vmatpush1.bf16.msra.mxu0 %v713
        %804 = vmatprep.subr.bf16.mxu0 %v710
        %805 = vmatpush1.bf16.msra.mxu0 %v709
        %806 = vmatprep.subr.bf16.mxu0 %v706
        %807 = vmatpush1.bf16.msra.mxu0 %v705
        %808 = vmatprep.subr.bf16.mxu0 %v702
        %809 = vmatpush1.bf16.msra.mxu0 %v701
        %810 = vmatprep.subr.bf16.mxu0 %v698
        %811 = vmatpush1.bf16.msra.mxu0 %v697
        %812 = vmatprep.subr.bf16.mxu0 %v694
        %813 = vmatpush1.bf16.msra.mxu0 %v693
        %814 = vmatprep.subr.bf16.mxu0 0
        %815 = vmatpush2.bf16.msra.mxu0 0
        %816 = vmatprep.subr.bf16.mxu0 0
        %817 = vmatpush2.bf16.msra.mxu0 0
        %818 = vmatprep.subr.bf16.mxu0 0
        %819 = vmatpush2.bf16.msra.mxu0 0
        %820 = vmatprep.subr.bf16.mxu0 0
        %821 = vmatpush2.bf16.msra.mxu0 0
        %822 = vmatprep.subr.bf16.mxu0 0
        %823 = vmatpush2.bf16.msra.mxu0 0
        %824 = vmatprep.subr.bf16.mxu0 0
        %825 = vmatpush2.bf16.msra.mxu0 0
        %826 = vmatprep.subr.bf16.mxu0 0
        %827 = vmatpush2.bf16.msra.mxu0 0
        %828 = vmatprep.subr.bf16.mxu0 0
        %829 = vmatpush2.bf16.msra.mxu0 0
        %830 = vmatprep.mubr.bf16.mxu0 0
        %831 = vmatmul.mubr.bf16.gmra.mxu0 %v546
        %v832 = vpop.f32.mrf.mxu0
        %v833 = vadd.f32 %v590, %v832
        %v834 = vpop.f32.mrf.mxu0
        %v835 = vadd.f32 %v594, %v834
        %v836 = vpop.f32.mrf.mxu0
        %v837 = vadd.f32 %v590, %v836
        %v838 = vpop.f32.mrf.mxu0
        %v839 = vadd.f32 %v594, %v838
        %840 = vdwg.mxu0
        %v841 = vmul.f32 %v790, 0.5
        %v842 = vmul.f32 %v792, 0.5
        %v843 = vmul.f32 %v833, 0.5
        %v844 = vmul.f32 %v835, 0.5
        %v845 = vmul.f32 %v794, 0.5
        %v846 = vmul.f32 %v796, 0.5
        %v847 = vmul.f32 %v837, 0.5
        %v848 = vmul.f32 %v839, 0.5
        %v849 = vtanh.pop %v841
        %v850 = vtanh.pop %v842
        %v851 = vtanh.pop %v843
        %v852 = vtanh.pop %v844
        %v853 = vtanh.pop %v845
        %v854 = vtanh.pop %v846
        %v855 = vtanh.pop %v847
        %v856 = vtanh.pop %v848
        %v857 = vmul.f32 %v849, 0.5
        %v858 = vmul.f32 %v850, 0.5
        %v859 = vmul.f32 %v851, 0.5
        %v860 = vmul.f32 %v852, 0.5
        %v861 = vmul.f32 %v853, 0.5
        %v862 = vmul.f32 %v854, 0.5
        %v863 = vmul.f32 %v855, 0.5
        %v864 = vmul.f32 %v856, 0.5
        %v865 = vadd.f32 %v857, 0.5
        %v866 = vadd.f32 %v858, 0.5
        %v867 = vadd.f32 %v859, 0.5
        %v868 = vadd.f32 %v860, 0.5
        %v869 = vadd.f32 %v861, 0.5
        %v870 = vadd.f32 %v862, 0.5
        %v871 = vadd.f32 %v863, 0.5
        %v872 = vadd.f32 %v864, 0.5
        %v873 = vpack.c.bf16 %v869, %v865
        %v874 = vpack.c.bf16 %v870, %v866
        %v875 = vpack.c.bf16 %v871, %v867
        %v876 = vpack.c.bf16 %v872, %v868
        %v877 = vld [vmem:[#allocation4] sm:$0xff]
        %v878 = vld [vmem:[#allocation4 + $0x8] sm:$0xff]
        %v879 = vld [vmem:[#allocation4 + $0x10] sm:$0xff]
        %v880 = vld [vmem:[#allocation4 + $0x18] sm:$0xff]
        %v881 = vld [vmem:[#allocation4 + $0x20] sm:$0xff]
        %v882 = vld [vmem:[#allocation4 + $0x28] sm:$0xff]
        %v883 = vld [vmem:[#allocation4 + $0x30] sm:$0xff]
        %v884 = vld [vmem:[#allocation4 + $0x38] sm:$0xff]
        %v885 = vld [vmem:[#allocation4 + $0x40] sm:$0xff]
        %v886 = vld [vmem:[#allocation4 + $0x48] sm:$0xff]
        %v887 = vld [vmem:[#allocation4 + $0x50] sm:$0xff]
        %v888 = vld [vmem:[#allocation4 + $0x58] sm:$0xff]
        %v889 = vld [vmem:[#allocation4 + $0x60] sm:$0xff]
        %v890 = vld [vmem:[#allocation4 + $0x68] sm:$0xff]
        %v891 = vld [vmem:[#allocation4 + $0x70] sm:$0xff]
        %v892 = vld [vmem:[#allocation4 + $0x78] sm:$0xff]
        %v893 = vld [vmem:[#allocation4 + $0x80] sm:$0xff]
        %v894 = vld [vmem:[#allocation4 + $0x88] sm:$0xff]
        %v895 = vld [vmem:[#allocation4 + $0x90] sm:$0xff]
        %v896 = vld [vmem:[#allocation4 + $0x98] sm:$0xff]
        %v897 = vld [vmem:[#allocation4 + $0xa0] sm:$0xff]
        %v898 = vld [vmem:[#allocation4 + $0xa8] sm:$0xff]
        %v899 = vld [vmem:[#allocation4 + $0xb0] sm:$0xff]
        %v900 = vld [vmem:[#allocation4 + $0xb8] sm:$0xff]
        %v901 = vld [vmem:[#allocation4 + $0xc0] sm:$0xff]
        %v902 = vld [vmem:[#allocation4 + $0xc8] sm:$0xff]
        %v903 = vld [vmem:[#allocation4 + $0xd0] sm:$0xff]
        %v904 = vld [vmem:[#allocation4 + $0xd8] sm:$0xff]
        %v905 = vld [vmem:[#allocation4 + $0xe0] sm:$0xff]
        %v906 = vld [vmem:[#allocation4 + $0xe8] sm:$0xff]
        %v907 = vld [vmem:[#allocation4 + $0xf0] sm:$0xff]
        %v908 = vld [vmem:[#allocation4 + $0xf8] sm:$0xff]
        %v909 = vld [vmem:[#allocation4 + $0x100] sm:$0xff]
        %v910 = vld [vmem:[#allocation4 + $0x108] sm:$0xff]
        %v911 = vld [vmem:[#allocation4 + $0x110] sm:$0xff]
        %v912 = vld [vmem:[#allocation4 + $0x118] sm:$0xff]
        %v913 = vld [vmem:[#allocation4 + $0x120] sm:$0xff]
        %v914 = vld [vmem:[#allocation4 + $0x128] sm:$0xff]
        %v915 = vld [vmem:[#allocation4 + $0x130] sm:$0xff]
        %v916 = vld [vmem:[#allocation4 + $0x138] sm:$0xff]
        %v917 = vld [vmem:[#allocation4 + $0x140] sm:$0xff]
        %v918 = vld [vmem:[#allocation4 + $0x148] sm:$0xff]
        %v919 = vld [vmem:[#allocation4 + $0x150] sm:$0xff]
        %v920 = vld [vmem:[#allocation4 + $0x158] sm:$0xff]
        %v921 = vld [vmem:[#allocation4 + $0x160] sm:$0xff]
        %v922 = vld [vmem:[#allocation4 + $0x168] sm:$0xff]
        %v923 = vld [vmem:[#allocation4 + $0x170] sm:$0xff]
        %v924 = vld [vmem:[#allocation4 + $0x178] sm:$0xff]
        %v925 = vld [vmem:[#allocation4 + $0x180] sm:$0xff]
        %v926 = vld [vmem:[#allocation4 + $0x188] sm:$0xff]
        %v927 = vld [vmem:[#allocation4 + $0x190] sm:$0xff]
        %v928 = vld [vmem:[#allocation4 + $0x198] sm:$0xff]
        %v929 = vld [vmem:[#allocation4 + $0x1a0] sm:$0xff]
        %v930 = vld [vmem:[#allocation4 + $0x1a8] sm:$0xff]
        %v931 = vld [vmem:[#allocation4 + $0x1b0] sm:$0xff]
        %v932 = vld [vmem:[#allocation4 + $0x1b8] sm:$0xff]
        %v933 = vld [vmem:[#allocation4 + $0x1c0] sm:$0xff]
        %v934 = vld [vmem:[#allocation4 + $0x1c8] sm:$0xff]
        %v935 = vld [vmem:[#allocation4 + $0x1d0] sm:$0xff]
        %v936 = vld [vmem:[#allocation4 + $0x1d8] sm:$0xff]
        %v937 = vld [vmem:[#allocation4 + $0x1e0] sm:$0xff]
        %v938 = vld [vmem:[#allocation4 + $0x1e8] sm:$0xff]
        %v939 = vld [vmem:[#allocation4 + $0x1f0] sm:$0xff]
        %v940 = vld [vmem:[#allocation4 + $0x1f8] sm:$0xff]
        %v941 = vlaneseq
        %v942 = vshrl.u32 %v941, 7
        %v943 = vsub.s32 1, %v942
        %v944 = vrot.slane %v396, %v943
        %v945 = vlaneseq
        %v946 = vshrl.u32 %v945, 7
        %v947 = vsub.s32 1, %v946
        %v948 = vrot.slane %v397, %v947
        %v1013 = vunpack.c.l.b16 %v877
        %v1014 = vunpack.c.h.b16 %v877
        %v1015 = vunpack.c.l.b16 %v878
        %v1016 = vunpack.c.h.b16 %v878
        %v1017 = vunpack.c.l.b16 %v879
        %v1018 = vunpack.c.h.b16 %v879
        %v1019 = vunpack.c.l.b16 %v880
        %v1020 = vunpack.c.h.b16 %v880
        %v1021 = vunpack.c.l.b16 %v881
        %v1022 = vunpack.c.h.b16 %v881
        %v1023 = vunpack.c.l.b16 %v882
        %v1024 = vunpack.c.h.b16 %v882
        %v1025 = vunpack.c.l.b16 %v883
        %v1026 = vunpack.c.h.b16 %v883
        %v1027 = vunpack.c.l.b16 %v884
        %v1028 = vunpack.c.h.b16 %v884
        %v1029 = vunpack.c.l.b16 %v885
        %v1030 = vunpack.c.h.b16 %v885
        %v1031 = vunpack.c.l.b16 %v886
        %v1032 = vunpack.c.h.b16 %v886
        %v1033 = vunpack.c.l.b16 %v887
        %v1034 = vunpack.c.h.b16 %v887
        %v1035 = vunpack.c.l.b16 %v888
        %v1036 = vunpack.c.h.b16 %v888
        %v1037 = vunpack.c.l.b16 %v889
        %v1038 = vunpack.c.h.b16 %v889
        %v1039 = vunpack.c.l.b16 %v890
        %v1040 = vunpack.c.h.b16 %v890
        %v1041 = vunpack.c.l.b16 %v891
        %v1042 = vunpack.c.h.b16 %v891
        %v1043 = vunpack.c.l.b16 %v892
        %v1044 = vunpack.c.h.b16 %v892
        %v1045 = vunpack.c.l.b16 %v893
        %v1046 = vunpack.c.h.b16 %v893
        %v1047 = vunpack.c.l.b16 %v894
        %v1048 = vunpack.c.h.b16 %v894
        %v1049 = vunpack.c.l.b16 %v895
        %v1050 = vunpack.c.h.b16 %v895
        %v1051 = vunpack.c.l.b16 %v896
        %v1052 = vunpack.c.h.b16 %v896
        %v1053 = vunpack.c.l.b16 %v897
        %v1054 = vunpack.c.h.b16 %v897
        %v1055 = vunpack.c.l.b16 %v898
        %v1056 = vunpack.c.h.b16 %v898
        %v1057 = vunpack.c.l.b16 %v899
        %v1058 = vunpack.c.h.b16 %v899
        %v1059 = vunpack.c.l.b16 %v900
        %v1060 = vunpack.c.h.b16 %v900
        %v1061 = vunpack.c.l.b16 %v901
        %v1062 = vunpack.c.h.b16 %v901
        %v1063 = vunpack.c.l.b16 %v902
        %v1064 = vunpack.c.h.b16 %v902
        %v1065 = vunpack.c.l.b16 %v903
        %v1066 = vunpack.c.h.b16 %v903
        %v1067 = vunpack.c.l.b16 %v904
        %v1068 = vunpack.c.h.b16 %v904
        %v1069 = vunpack.c.l.b16 %v905
        %v1070 = vunpack.c.h.b16 %v905
        %v1071 = vunpack.c.l.b16 %v906
        %v1072 = vunpack.c.h.b16 %v906
        %v1073 = vunpack.c.l.b16 %v907
        %v1074 = vunpack.c.h.b16 %v907
        %v1075 = vunpack.c.l.b16 %v908
        %v1076 = vunpack.c.h.b16 %v908
        %v1077 = vunpack.c.l.b16 %v909
        %v1078 = vunpack.c.h.b16 %v909
        %v1079 = vunpack.c.l.b16 %v910
        %v1080 = vunpack.c.h.b16 %v910
        %v1081 = vunpack.c.l.b16 %v911
        %v1082 = vunpack.c.h.b16 %v911
        %v1083 = vunpack.c.l.b16 %v912
        %v1084 = vunpack.c.h.b16 %v912
        %v1085 = vunpack.c.l.b16 %v913
        %v1086 = vunpack.c.h.b16 %v913
        %v1087 = vunpack.c.l.b16 %v914
        %v1088 = vunpack.c.h.b16 %v914
        %v1089 = vunpack.c.l.b16 %v915
        %v1090 = vunpack.c.h.b16 %v915
        %v1091 = vunpack.c.l.b16 %v916
        %v1092 = vunpack.c.h.b16 %v916
        %v1093 = vunpack.c.l.b16 %v917
        %v1094 = vunpack.c.h.b16 %v917
        %v1095 = vunpack.c.l.b16 %v918
        %v1096 = vunpack.c.h.b16 %v918
        %v1097 = vunpack.c.l.b16 %v919
        %v1098 = vunpack.c.h.b16 %v919
        %v1099 = vunpack.c.l.b16 %v920
        %v1100 = vunpack.c.h.b16 %v920
        %v1101 = vunpack.c.l.b16 %v921
        %v1102 = vunpack.c.h.b16 %v921
        %v1103 = vunpack.c.l.b16 %v922
        %v1104 = vunpack.c.h.b16 %v922
        %v1105 = vunpack.c.l.b16 %v923
        %v1106 = vunpack.c.h.b16 %v923
        %v1107 = vunpack.c.l.b16 %v924
        %v1108 = vunpack.c.h.b16 %v924
        %v1109 = vunpack.c.l.b16 %v925
        %v1110 = vunpack.c.h.b16 %v925
        %v1111 = vunpack.c.l.b16 %v926
        %v1112 = vunpack.c.h.b16 %v926
        %v1113 = vunpack.c.l.b16 %v927
        %v1114 = vunpack.c.h.b16 %v927
        %v1115 = vunpack.c.l.b16 %v928
        %v1116 = vunpack.c.h.b16 %v928
        %v1117 = vunpack.c.l.b16 %v929
        %v1118 = vunpack.c.h.b16 %v929
        %v1119 = vunpack.c.l.b16 %v930
        %v1120 = vunpack.c.h.b16 %v930
        %v1121 = vunpack.c.l.b16 %v931
        %v1122 = vunpack.c.h.b16 %v931
        %v1123 = vunpack.c.l.b16 %v932
        %v1124 = vunpack.c.h.b16 %v932
        %v1125 = vunpack.c.l.b16 %v933
        %v1126 = vunpack.c.h.b16 %v933
        %v1127 = vunpack.c.l.b16 %v934
        %v1128 = vunpack.c.h.b16 %v934
        %v1129 = vunpack.c.l.b16 %v935
        %v1130 = vunpack.c.h.b16 %v935
        %v1131 = vunpack.c.l.b16 %v936
        %v1132 = vunpack.c.h.b16 %v936
        %v1133 = vunpack.c.l.b16 %v937
        %v1134 = vunpack.c.h.b16 %v937
        %v1135 = vunpack.c.l.b16 %v938
        %v1136 = vunpack.c.h.b16 %v938
        %v1137 = vunpack.c.l.b16 %v939
        %v1138 = vunpack.c.h.b16 %v939
        %v1139 = vunpack.c.l.b16 %v940
        %v1140 = vunpack.c.h.b16 %v940
        %v1141 = vpack.c.b16 %v1015, %v1013
        %v1142 = vpack.c.b16 %v1016, %v1014
        %v1143 = vpack.c.b16 %v1019, %v1017
        %v1144 = vpack.c.b16 %v1020, %v1018
        %v1145 = vpack.c.b16 %v1023, %v1021
        %v1146 = vpack.c.b16 %v1024, %v1022
        %v1147 = vpack.c.b16 %v1027, %v1025
        %v1148 = vpack.c.b16 %v1028, %v1026
        %v1149 = vpack.c.b16 %v1031, %v1029
        %v1150 = vpack.c.b16 %v1032, %v1030
        %v1151 = vpack.c.b16 %v1035, %v1033
        %v1152 = vpack.c.b16 %v1036, %v1034
        %v1153 = vpack.c.b16 %v1039, %v1037
        %v1154 = vpack.c.b16 %v1040, %v1038
        %v1155 = vpack.c.b16 %v1043, %v1041
        %v1156 = vpack.c.b16 %v1044, %v1042
        %v1157 = vpack.c.b16 %v1047, %v1045
        %v1158 = vpack.c.b16 %v1048, %v1046
        %v1159 = vpack.c.b16 %v1051, %v1049
        %v1160 = vpack.c.b16 %v1052, %v1050
        %v1161 = vpack.c.b16 %v1055, %v1053
        %v1162 = vpack.c.b16 %v1056, %v1054
        %v1163 = vpack.c.b16 %v1059, %v1057
        %v1164 = vpack.c.b16 %v1060, %v1058
        %v1165 = vpack.c.b16 %v1063, %v1061
        %v1166 = vpack.c.b16 %v1064, %v1062
        %v1167 = vpack.c.b16 %v1067, %v1065
        %v1168 = vpack.c.b16 %v1068, %v1066
        %v1169 = vpack.c.b16 %v1071, %v1069
        %v1170 = vpack.c.b16 %v1072, %v1070
        %v1171 = vpack.c.b16 %v1075, %v1073
        %v1172 = vpack.c.b16 %v1076, %v1074
        %v1173 = vpack.c.b16 %v1079, %v1077
        %v1174 = vpack.c.b16 %v1080, %v1078
        %v1175 = vpack.c.b16 %v1083, %v1081
        %v1176 = vpack.c.b16 %v1084, %v1082
        %v1177 = vpack.c.b16 %v1087, %v1085
        %v1178 = vpack.c.b16 %v1088, %v1086
        %v1179 = vpack.c.b16 %v1091, %v1089
        %v1180 = vpack.c.b16 %v1092, %v1090
        %v1181 = vpack.c.b16 %v1095, %v1093
        %v1182 = vpack.c.b16 %v1096, %v1094
        %v1183 = vpack.c.b16 %v1099, %v1097
        %v1184 = vpack.c.b16 %v1100, %v1098
        %v1185 = vpack.c.b16 %v1103, %v1101
        %v1186 = vpack.c.b16 %v1104, %v1102
        %v1187 = vpack.c.b16 %v1107, %v1105
        %v1188 = vpack.c.b16 %v1108, %v1106
        %v1189 = vpack.c.b16 %v1111, %v1109
        %v1190 = vpack.c.b16 %v1112, %v1110
        %v1191 = vpack.c.b16 %v1115, %v1113
        %v1192 = vpack.c.b16 %v1116, %v1114
        %v1193 = vpack.c.b16 %v1119, %v1117
        %v1194 = vpack.c.b16 %v1120, %v1118
        %v1195 = vpack.c.b16 %v1123, %v1121
        %v1196 = vpack.c.b16 %v1124, %v1122
        %v1197 = vpack.c.b16 %v1127, %v1125
        %v1198 = vpack.c.b16 %v1128, %v1126
        %v1199 = vpack.c.b16 %v1131, %v1129
        %v1200 = vpack.c.b16 %v1132, %v1130
        %v1201 = vpack.c.b16 %v1135, %v1133
        %v1202 = vpack.c.b16 %v1136, %v1134
        %v1203 = vpack.c.b16 %v1139, %v1137
        %v1204 = vpack.c.b16 %v1140, %v1138
        %1269 = vmatprep.subr.bf16.mxu0 %v1156
        %1270 = vmatpush1.bf16.msra.mxu0 %v1155
        %1271 = vmatprep.subr.bf16.mxu0 %v1154
        %1272 = vmatpush1.bf16.msra.mxu0 %v1153
        %1273 = vmatprep.subr.bf16.mxu0 %v1152
        %1274 = vmatpush1.bf16.msra.mxu0 %v1151
        %1275 = vmatprep.subr.bf16.mxu0 %v1150
        %1276 = vmatpush1.bf16.msra.mxu0 %v1149
        %1277 = vmatprep.subr.bf16.mxu0 %v1148
        %1278 = vmatpush1.bf16.msra.mxu0 %v1147
        %1279 = vmatprep.subr.bf16.mxu0 %v1146
        %1280 = vmatpush1.bf16.msra.mxu0 %v1145
        %1281 = vmatprep.subr.bf16.mxu0 %v1144
        %1282 = vmatpush1.bf16.msra.mxu0 %v1143
        %1283 = vmatprep.subr.bf16.mxu0 %v1142
        %1284 = vmatpush1.bf16.msra.mxu0 %v1141
        %1285 = vmatprep.subr.bf16.mxu0 %v1172
        %1286 = vmatpush2.bf16.msra.mxu0 %v1171
        %1287 = vmatprep.subr.bf16.mxu0 %v1170
        %1288 = vmatpush2.bf16.msra.mxu0 %v1169
        %1289 = vmatprep.subr.bf16.mxu0 %v1168
        %1290 = vmatpush2.bf16.msra.mxu0 %v1167
        %1291 = vmatprep.subr.bf16.mxu0 %v1166
        %1292 = vmatpush2.bf16.msra.mxu0 %v1165
        %1293 = vmatprep.subr.bf16.mxu0 %v1164
        %1294 = vmatpush2.bf16.msra.mxu0 %v1163
        %1295 = vmatprep.subr.bf16.mxu0 %v1162
        %1296 = vmatpush2.bf16.msra.mxu0 %v1161
        %1297 = vmatprep.subr.bf16.mxu0 %v1160
        %1298 = vmatpush2.bf16.msra.mxu0 %v1159
        %1299 = vmatprep.subr.bf16.mxu0 %v1158
        %1300 = vmatpush2.bf16.msra.mxu0 %v1157
        %1301 = vmatprep.mubr.bf16.mxu0 %v874
        %1302 = vmatmul.mubr.bf16.gmra.mxu0 %v873
        %v1303 = vpop.f32.mrf.mxu0
        %v1304 = vadd.f32 %v944, %v1303
        %v1305 = vpop.f32.mrf.mxu0
        %v1306 = vadd.f32 %v948, %v1305
        %v1307 = vpop.f32.mrf.mxu0
        %v1308 = vadd.f32 %v944, %v1307
        %v1309 = vpop.f32.mrf.mxu0
        %v1310 = vadd.f32 %v948, %v1309
        %1311 = vdwg.mxu0
        %1312 = vmatprep.subr.bf16.mxu0 %v1188
        %1313 = vmatpush1.bf16.msra.mxu0 %v1187
        %1314 = vmatprep.subr.bf16.mxu0 %v1186
        %1315 = vmatpush1.bf16.msra.mxu0 %v1185
        %1316 = vmatprep.subr.bf16.mxu0 %v1184
        %1317 = vmatpush1.bf16.msra.mxu0 %v1183
        %1318 = vmatprep.subr.bf16.mxu0 %v1182
        %1319 = vmatpush1.bf16.msra.mxu0 %v1181
        %1320 = vmatprep.subr.bf16.mxu0 %v1180
        %1321 = vmatpush1.bf16.msra.mxu0 %v1179
        %1322 = vmatprep.subr.bf16.mxu0 %v1178
        %1323 = vmatpush1.bf16.msra.mxu0 %v1177
        %1324 = vmatprep.subr.bf16.mxu0 %v1176
        %1325 = vmatpush1.bf16.msra.mxu0 %v1175
        %1326 = vmatprep.subr.bf16.mxu0 %v1174
        %1327 = vmatpush1.bf16.msra.mxu0 %v1173
        %1328 = vmatprep.subr.bf16.mxu0 %v1204
        %1329 = vmatpush2.bf16.msra.mxu0 %v1203
        %1330 = vmatprep.subr.bf16.mxu0 %v1202
        %1331 = vmatpush2.bf16.msra.mxu0 %v1201
        %1332 = vmatprep.subr.bf16.mxu0 %v1200
        %1333 = vmatpush2.bf16.msra.mxu0 %v1199
        %1334 = vmatprep.subr.bf16.mxu0 %v1198
        %1335 = vmatpush2.bf16.msra.mxu0 %v1197
        %1336 = vmatprep.subr.bf16.mxu0 %v1196
        %1337 = vmatpush2.bf16.msra.mxu0 %v1195
        %1338 = vmatprep.subr.bf16.mxu0 %v1194
        %1339 = vmatpush2.bf16.msra.mxu0 %v1193
        %1340 = vmatprep.subr.bf16.mxu0 %v1192
        %1341 = vmatpush2.bf16.msra.mxu0 %v1191
        %1342 = vmatprep.subr.bf16.mxu0 %v1190
        %1343 = vmatpush2.bf16.msra.mxu0 %v1189
        %1344 = vmatprep.mubr.bf16.mxu0 %v876
        %1345 = vmatmul.mubr.bf16.gmra.mxu0 %v875
        %v1346 = vpop.f32.mrf.mxu0
        %v1347 = vadd.f32 %v1304, %v1346
        %v1348 = vpop.f32.mrf.mxu0
        %v1349 = vadd.f32 %v1306, %v1348
        %v1350 = vpop.f32.mrf.mxu0
        %v1351 = vadd.f32 %v1308, %v1350
        %v1352 = vpop.f32.mrf.mxu0
        %v1353 = vadd.f32 %v1310, %v1352
        %1354 = vdwg.mxu0
        %v1355 = vmul.f32 %v1347, 0.5
        %v1356 = vmul.f32 %v1349, 0.5
        %v1357 = vmul.f32 %v1351, 0.5
        %v1358 = vmul.f32 %v1353, 0.5
        %v1359 = vtanh.pop %v1355
        %v1360 = vtanh.pop %v1356
        %v1361 = vtanh.pop %v1357
        %v1362 = vtanh.pop %v1358
        %v1363 = vmul.f32 %v1359, 0.5
        %v1364 = vmul.f32 %v1360, 0.5
        %v1365 = vmul.f32 %v1361, 0.5
        %v1366 = vmul.f32 %v1362, 0.5
        %v1367 = vadd.f32 %v1363, 0.5
        %v1368 = vadd.f32 %v1364, 0.5
        %v1369 = vadd.f32 %v1365, 0.5
        %v1370 = vadd.f32 %v1366, 0.5
        %v1371 = vpack.c.bf16 %v1369, %v1367
        %v1372 = vpack.c.bf16 %v1370, %v1368
        %v1373 = vld [vmem:[%s6] sm:$0xf]
        %v1374 = vld [vmem:[%s6 + $0x4] sm:$0xf]
        %v1375 = vld [vmem:[%s6 + $0x8] sm:$0xf]
        %v1376 = vld [vmem:[%s6 + $0xc] sm:$0xf]
        %v1377 = vld [vmem:[%s6 + $0x10] sm:$0xf]
        %v1378 = vld [vmem:[%s6 + $0x14] sm:$0xf]
        %v1379 = vld [vmem:[%s6 + $0x18] sm:$0xf]
        %v1380 = vld [vmem:[%s6 + $0x1c] sm:$0xf]
        %v1381 = vld [vmem:[%s6 + $0x20] sm:$0xf]
        %v1382 = vld [vmem:[%s6 + $0x24] sm:$0xf]
        %v1383 = vld [vmem:[%s6 + $0x28] sm:$0xf]
        %v1384 = vld [vmem:[%s6 + $0x2c] sm:$0xf]
        %v1385 = vld [vmem:[%s6 + $0x30] sm:$0xf]
        %v1386 = vld [vmem:[%s6 + $0x34] sm:$0xf]
        %v1387 = vld [vmem:[%s6 + $0x38] sm:$0xf]
        %v1388 = vld [vmem:[%s6 + $0x3c] sm:$0xf]
        %v1389 = vld [vmem:[%s6 + $0x40] sm:$0xf]
        %v1390 = vld [vmem:[%s6 + $0x44] sm:$0xf]
        %v1391 = vld [vmem:[%s6 + $0x48] sm:$0xf]
        %v1392 = vld [vmem:[%s6 + $0x4c] sm:$0xf]
        %v1393 = vld [vmem:[%s6 + $0x50] sm:$0xf]
        %v1394 = vld [vmem:[%s6 + $0x54] sm:$0xf]
        %v1395 = vld [vmem:[%s6 + $0x58] sm:$0xf]
        %v1396 = vld [vmem:[%s6 + $0x5c] sm:$0xf]
        %v1397 = vld [vmem:[%s6 + $0x60] sm:$0xf]
        %v1398 = vld [vmem:[%s6 + $0x64] sm:$0xf]
        %v1399 = vld [vmem:[%s6 + $0x68] sm:$0xf]
        %v1400 = vld [vmem:[%s6 + $0x6c] sm:$0xf]
        %v1401 = vld [vmem:[%s6 + $0x70] sm:$0xf]
        %v1402 = vld [vmem:[%s6 + $0x74] sm:$0xf]
        %v1403 = vld [vmem:[%s6 + $0x78] sm:$0xf]
        %v1404 = vld [vmem:[%s6 + $0x7c] sm:$0xf]
        %v1405 = vlaneseq
        %v1406 = vshrl.u32 %v1405, 7
        %v1407 = vsub.s32 2, %v1406
        %v1408 = vrot.slane %v396, %v1407
        %v1441 = vunpack.c.l.b16 %v1373
        %v1442 = vunpack.c.l.b16 %v1374
        %v1443 = vunpack.c.l.b16 %v1375
        %v1444 = vunpack.c.l.b16 %v1376
        %v1445 = vunpack.c.l.b16 %v1377
        %v1446 = vunpack.c.l.b16 %v1378
        %v1447 = vunpack.c.l.b16 %v1379
        %v1448 = vunpack.c.l.b16 %v1380
        %v1449 = vunpack.c.l.b16 %v1381
        %v1450 = vunpack.c.l.b16 %v1382
        %v1451 = vunpack.c.l.b16 %v1383
        %v1452 = vunpack.c.l.b16 %v1384
        %v1453 = vunpack.c.l.b16 %v1385
        %v1454 = vunpack.c.l.b16 %v1386
        %v1455 = vunpack.c.l.b16 %v1387
        %v1456 = vunpack.c.l.b16 %v1388
        %v1457 = vunpack.c.l.b16 %v1389
        %v1458 = vunpack.c.l.b16 %v1390
        %v1459 = vunpack.c.l.b16 %v1391
        %v1460 = vunpack.c.l.b16 %v1392
        %v1461 = vunpack.c.l.b16 %v1393
        %v1462 = vunpack.c.l.b16 %v1394
        %v1463 = vunpack.c.l.b16 %v1395
        %v1464 = vunpack.c.l.b16 %v1396
        %v1465 = vunpack.c.l.b16 %v1397
        %v1466 = vunpack.c.l.b16 %v1398
        %v1467 = vunpack.c.l.b16 %v1399
        %v1468 = vunpack.c.l.b16 %v1400
        %v1469 = vunpack.c.l.b16 %v1401
        %v1470 = vunpack.c.l.b16 %v1402
        %v1471 = vunpack.c.l.b16 %v1403
        %v1472 = vunpack.c.l.b16 %v1404
        %v1473 = vpack.c.b16 %v1442, %v1441
        %v1474 = vpack.c.b16 %v1444, %v1443
        %v1475 = vpack.c.b16 %v1446, %v1445
        %v1476 = vpack.c.b16 %v1448, %v1447
        %v1477 = vpack.c.b16 %v1450, %v1449
        %v1478 = vpack.c.b16 %v1452, %v1451
        %v1479 = vpack.c.b16 %v1454, %v1453
        %v1480 = vpack.c.b16 %v1456, %v1455
        %v1481 = vpack.c.b16 %v1458, %v1457
        %v1482 = vpack.c.b16 %v1460, %v1459
        %v1483 = vpack.c.b16 %v1462, %v1461
        %v1484 = vpack.c.b16 %v1464, %v1463
        %v1485 = vpack.c.b16 %v1466, %v1465
        %v1486 = vpack.c.b16 %v1468, %v1467
        %v1487 = vpack.c.b16 %v1470, %v1469
        %v1488 = vpack.c.b16 %v1472, %v1471
        %1505 = vmatprep.subr.bf16.mxu0 0
        %1506 = vmatpush1.bf16.msra.mxu0 %v1480
        %1507 = vmatprep.subr.bf16.mxu0 0
        %1508 = vmatpush1.bf16.msra.mxu0 %v1479
        %1509 = vmatprep.subr.bf16.mxu0 0
        %1510 = vmatpush1.bf16.msra.mxu0 %v1478
        %1511 = vmatprep.subr.bf16.mxu0 0
        %1512 = vmatpush1.bf16.msra.mxu0 %v1477
        %1513 = vmatprep.subr.bf16.mxu0 0
        %1514 = vmatpush1.bf16.msra.mxu0 %v1476
        %1515 = vmatprep.subr.bf16.mxu0 0
        %1516 = vmatpush1.bf16.msra.mxu0 %v1475
        %1517 = vmatprep.subr.bf16.mxu0 0
        %1518 = vmatpush1.bf16.msra.mxu0 %v1474
        %1519 = vmatprep.subr.bf16.mxu0 0
        %1520 = vmatpush1.bf16.msra.mxu0 %v1473
        %1521 = vmatprep.subr.bf16.mxu0 0
        %1522 = vmatpush2.bf16.msra.mxu0 %v1488
        %1523 = vmatprep.subr.bf16.mxu0 0
        %1524 = vmatpush2.bf16.msra.mxu0 %v1487
        %1525 = vmatprep.subr.bf16.mxu0 0
        %1526 = vmatpush2.bf16.msra.mxu0 %v1486
        %1527 = vmatprep.subr.bf16.mxu0 0
        %1528 = vmatpush2.bf16.msra.mxu0 %v1485
        %1529 = vmatprep.subr.bf16.mxu0 0
        %1530 = vmatpush2.bf16.msra.mxu0 %v1484
        %1531 = vmatprep.subr.bf16.mxu0 0
        %1532 = vmatpush2.bf16.msra.mxu0 %v1483
        %1533 = vmatprep.subr.bf16.mxu0 0
        %1534 = vmatpush2.bf16.msra.mxu0 %v1482
        %1535 = vmatprep.subr.bf16.mxu0 0
        %1536 = vmatpush2.bf16.msra.mxu0 %v1481
        %1537 = vmatprep.mubr.bf16.mxu0 %v1372
        %1538 = vmatmul.mubr.bf16.gmra.mxu0 %v1371
        %v1539 = vpop.f32.mrf.mxu0
        %v1540 = vadd.f32 %v1408, %v1539
        %v1541 = vpop.f32.mrf.mxu0
        %v1542 = vpop.f32.mrf.mxu0
        %v1543 = vadd.f32 %v1408, %v1542
        %v1544 = vpop.f32.mrf.mxu0
        %1545 = vdwg.mxu0
        %v1546 = vmul.f32 %v1540, 0.5
        %v1547 = vmul.f32 %v1543, 0.5
        %v1548 = vtanh.pop %v1546
        %v1549 = vtanh.pop %v1547
        %v1550 = vmul.f32 %v1548, 0.5
        %v1551 = vmul.f32 %v1549, 0.5
        %v1552 = vadd.f32 %v1550, 0.5
        %v1553 = vadd.f32 %v1551, 0.5
        %v1554 = vmax.f32 %v1540, 0.0
        %v1555 = vmax.f32 %v1543, 0.0
        %v1556 = vlaneseq
        %v1557 = vshrl.u32 %v1556, 7
        %v1558 = vsub.s32 4, %v1557
        %v1559 = vrot.slane %v396, %v1558
        %1561 = vrot.lane.b32.xlu0 %v1559, 1
        %v1562 = vpop.permute.xlu0 %1561
        %v1564 = vmul.f32 %v1554, %v1562
        %v1565 = vmul.f32 %v1555, %v1562
        %1568 = vrot.lane.b32.xlu0 %v1564, 127
        %v1569 = vpop.permute.xlu0 %1568
        %1570 = vrot.lane.b32.xlu0 %v1565, 127
        %v1571 = vpop.permute.xlu0 %1570
        %vm1574 = vcmask 80896
        %v1575 = vsel %vm1574, %v1569, 0.0
        %1576 = vadd.xlane.f32.xlu0 %v1575
        %v1577 = vpop.xlane.xlu0 %1576
        %v1578 = vsel %vm1574, %v1571, 0.0
        %1579 = vadd.xlane.f32.xlu0 %v1578
        %v1580 = vpop.xlane.xlu0 %1579
        %v1581 = vadd.f32 %v1577, %v513
        %v1582 = vadd.f32 %v1580, %v513
        %v1583 = vlaneseq
        %v1584 = vshrl.u32 %v1583, 7
        %v1585 = vsub.s32 5, %v1584
        %v1586 = vrot.slane %v396, %v1585
        %1588 = vrot.lane.b32.xlu0 %v1586, 1
        %v1589 = vpop.permute.xlu0 %1588
        %v1591 = vmul.f32 %v1554, %v1589
        %v1592 = vmul.f32 %v1555, %v1589
        %1595 = vrot.lane.b32.xlu0 %v1591, 127
        %v1596 = vpop.permute.xlu0 %1595
        %1597 = vrot.lane.b32.xlu0 %v1592, 127
        %v1598 = vpop.permute.xlu0 %1597
        %v1601 = vsel %vm1574, %v1596, 0.0
        %1602 = vadd.xlane.f32.xlu0 %v1601
        %v1603 = vpop.xlane.xlu0 %1602
        %v1604 = vsel %vm1574, %v1598, 0.0
        %1605 = vadd.xlane.f32.xlu0 %v1604
        %v1606 = vpop.xlane.xlu0 %1605
        %v1607 = vadd.f32 %v1603, %v513
        %v1608 = vadd.f32 %v1606, %v513
        %v1609 = vlaneseq
        %v1610 = vand.u32 %v1609, 127
        %vm1611 = vcmp.eq.s32.totalorder %v1610, 0
        %vm1612 = vcmp.eq.s32.totalorder %v1610, 1
        %vm1613 = vcmp.eq.s32.totalorder %v1610, 2
        %1615 = vset.pattern.permute.xlu0 2
        %1616 = vperm.xlu0 %1615, %v1607
        %v1617 = vpop.permute.xlu0 %1616
        %1620 = vset.pattern.permute.xlu0 2
        %1621 = vperm.xlu0 %1620, %v1608
        %v1622 = vpop.permute.xlu0 %1621
        %v1624 = vsel %vm1613, %v1617, 0.0
        %v1625 = vsel %vm1613, %v1622, 0.0
        %1627 = vset.pattern.permute.xlu0 1
        %1628 = vperm.xlu0 %1627, %v1581
        %v1629 = vpop.permute.xlu0 %1628
        %1632 = vset.pattern.permute.xlu0 1
        %1633 = vperm.xlu0 %1632, %v1582
        %v1634 = vpop.permute.xlu0 %1633
        %v1636 = vsel %vm1612, %v1629, %v1624
        %v1637 = vsel %vm1612, %v1634, %v1625
        %1639 = vset.pattern.permute.xlu0 0
        %1640 = vperm.xlu0 %1639, %v1552
        %v1641 = vpop.permute.xlu0 %1640
        %1644 = vset.pattern.permute.xlu0 0
        %1645 = vperm.xlu0 %1644, %v1553
        %v1646 = vpop.permute.xlu0 %1645
        %v1648 = vsel %vm1611, %v1641, %v1636
        %v1649 = vsel %vm1611, %v1646, %v1637
        %1650 = vst [vmem:[%s393] sm:$0xff] %v1648
        %1651 = vst [vmem:[%s393 + $0x8] sm:$0xff] %v1649
        %s1652 = smul.u32 2, %s21
        %p1653 = scmp.lt.s32.totalorder %s1652, 3
        %s1654 = scalar_select %p1653, %s1652, 3
        %s1655 = smul.addr %s1654, 8
        %s1656 = scalar_lea.vmem %s8, %s1655
        // Predicated region
        $region65: #{net_forward.1} parent=51 // pred_check
          %p1657 = pneg %p222
        $region66: #{net_forward.1} parent=51 // pred_check_branch
          %1659 = sbr.rel (%p1657) target = $region68
        $region67: #{net_forward.1} parent=51 // pred_region
          %s1660 = smul.u32 2, %s21
        $region68: #{net_forward.1} parent=51 // pred_fallthru
          _
      $region52: #{net_forward.1} parent=5 // pred_fallthru
        _
      %p1661 = scmp.le.s32.totalorder 2, %s16
      // Predicated region
      $region69: #{net_forward.1} parent=5 // pred_check
        %p1662 = pneg %p1661
      $region70: #{net_forward.1} parent=5 // pred_check_branch
        %1664 = sbr.rel (%p1662) target = $region72
      $region71: #{net_forward.1} parent=5 // pred_region
        %s1665 = ssub.s32 %s16, 2
        // Predicated region
        $region73: #{net_forward.1} parent=71 // pred_check
          %p1666 = pneg %p228
        $region74: #{net_forward.1} parent=71 // pred_check_branch
          %1668 = sbr.rel (%p1666) target = $region76
        $region75: #{net_forward.1} parent=71 // pred_region
          %s1669 = smul.u32 2, %s22
          %p1670 = scmp.lt.s32.totalorder %s1669, 3
          %s1671 = scalar_select %p1670, %s1669, 3
          %s1672 = smul.addr %s1671, 8
          %s1673 = scalar_lea.vmem %s8, %s1672
        $region76: #{net_forward.1} parent=71 // pred_fallthru
          _
      $region72: #{net_forward.1} parent=5 // pred_fallthru
        _
    $region6: #{net_forward.1} parent=1 // loop_footer
      %s20 = sadd.s32 1, %s16
    $region7: #{net_forward.1} parent=1 // loop_footer_branch
      %15 = sbr.rel target = $region3
    $region8: #{net_forward.1} parent=1 // loop_exit
      _
    %1674 = vsyncpa [#allocation3], 1
    %s1675 = scalar_lea.sflag [#allocation3], 1
    %1676 = vsyncpa %s1675, 1
    %1677 = vsyncpa [#allocation5], 1

</llo_original>
